<compile_context>
chip_gen: v6e
topology: v6e:2x2x1
jax: 0.10.0
libtpu: 0.0.40
codegen_flags: <defaults>
</compile_context>

<pallas_src>
import functools

import jax
import jax.numpy as jnp
from jax.experimental import pallas as pl
from jax.experimental.pallas import tpu as pltpu

N_BINS = 100
NB_PAD = 128        # bins axis padded to a full sublane block inside the kernel
KDIM = 16           # im2col features: 9 taps + 1 ones-row (bias) + 6 zero rows
MIN_VAL = 0.1
MAX_VAL = 10.0
EMB = 128           # mViT embedding_dim / n_query_channels
PATCH = 16          # mViT patch_size
DPT_SCALE = 0.000305
DPT_SHIFT = 0.1378


# --------------------------------------------------------------------------
# DPT base surrogate (plain jnp — too tiny to be worth a pallas_call)
# --------------------------------------------------------------------------
def dpt_base_surrogate(x_nchw, w, b):
    # TODO(synk): full DPT ViT-hybrid backbone (vitb_rn50_384) has no compact Pallas
    # equivalent; surrogate keeps the per-pixel depth-head arithmetic only.
    inv = jnp.einsum("nchw,c->nhw", x_nchw, w[:, 0]) + b[0, 0]
    inv = jnp.maximum(inv, 0.0)                 # non_negative=True
    d = DPT_SCALE * inv + DPT_SHIFT             # invert=True branch of DPTDepthModel
    d = jnp.maximum(d, 1e-8)
    return 1.0 / d                              # (N, H, W)


# --------------------------------------------------------------------------
# Fused bins kernel: one (128,16)@(16,tile) matmul (bias folded) -> softmax with
# MXU reductions -> per-pixel expectation over bin centers.
# --------------------------------------------------------------------------
def _bins_pred_kernel(xcol_ref, w_ref, c_ref, o_ref):
    # logits[b, p] = sum_k W[b, k] * xcol[k, p]; the bias is folded into W[:, 9]
    # (matched by the all-ones row 9 of xcol); padded bins (b >= 100) carry -1e30
    # there, so they vanish after exp.  Bins on sublanes, pixels on lanes.
    logits = jnp.dot(w_ref[...], xcol_ref[...],
                     preferred_element_type=jnp.float32)        # (128, tile)
    m = jnp.max(logits, axis=0, keepdims=True)                  # (1, tile)
    e = jnp.exp(logits - m)                                     # (128, tile)
    # Softmax reductions on the MXU: C row 0 = bin centers (0 on padded bins),
    # C row 1 = ones -> nd[0] = sum(e * centers), nd[1] = sum(e).
    nd = jnp.dot(c_ref[...], e, preferred_element_type=jnp.float32)  # (8, tile)
    o_ref[...] = nd[0:1, :] * pl.reciprocal(nd[1:2, :], approx=False)


def fused_bins_pred(xcolT, w_all, cmat, *, num_tiles=1):
    k16, hw = xcolT.shape
    hw_pad = pl.cdiv(hw, 128 * num_tiles) * 128 * num_tiles
    if hw_pad != hw:
        xcolT = jnp.pad(xcolT, ((0, 0), (0, hw_pad - hw)))
    tile = hw_pad // num_tiles
    pred = pl.pallas_call(
        _bins_pred_kernel,
        out_shape=jax.ShapeDtypeStruct((1, hw_pad), jnp.float32),
        grid=(num_tiles,),
        in_specs=[
            pl.BlockSpec((k16, tile), lambda i: (0, i)),        # lane-dense pixels
            pl.BlockSpec((NB_PAD, k16), lambda i: (0, 0)),      # folded weights+bias
            pl.BlockSpec((8, NB_PAD), lambda i: (0, 0)),        # [centers; ones] rows
        ],
        out_specs=pl.BlockSpec((1, tile), lambda i: (0, i)),    # lane-dense output
        compiler_params=pltpu.CompilerParams(
            dimension_semantics=("parallel",)),
    )(xcolT, w_all, cmat)
    return pred[0, :hw]


# --------------------------------------------------------------------------
# Forward
# --------------------------------------------------------------------------
def dpt_bins_forward(x, params, *, hs=32, ws=48, num_tiles=1):
    # 1) DPT base (surrogate) -> depth map (N, H, W)
    dpt_out = dpt_base_surrogate(x, params["dpt_w"], params["dpt_b"])
    n = dpt_out.shape[0]

    # 2) resize to the mViT resolution (208x272 in the original, scaled down here)
    # TODO(synk): torchvision F.resize antialiasing not reproduced; plain bilinear.
    inter = jax.image.resize(dpt_out, (n, hs, ws), method="bilinear")
    # mvit_in = inter[None, :] -> (1, N, hs, ws); mViT in_channels == 1 => N == 1
    img = inter[0]                                            # (hs, ws)

    # 3) mViT bins branch: patch embedding + regressor (norm='linear')
    # TODO(synk): mViT PatchTransformerEncoder (positional encodings + MHA layers)
    # not implemented; regression head = mean-pooled patch embedding.
    patches = img.reshape(hs // PATCH, PATCH, ws // PATCH, PATCH)
    patches = patches.transpose(0, 2, 1, 3).reshape(-1, PATCH * PATCH)   # (P, 256)
    emb = patches @ params["wp"] + params["bp"]                          # (P, 128)
    head = emb.mean(axis=0)
    h1 = jax.nn.leaky_relu(head @ params["r_w1"] + params["r_b1"])
    h2 = jax.nn.leaky_relu(h1 @ params["r_w2"] + params["r_b2"])
    y = h2 @ params["r_w3"] + params["r_b3"]
    y = jax.nn.relu(y) + 0.1                                             # norm='linear'
    bin_widths_normed = (y / jnp.sum(y))[None, :]                        # (1, n_bins)

    # 4) bin edges / centers (exact DptBinsOriginal arithmetic)
    bin_widths = (MAX_VAL - MIN_VAL) * bin_widths_normed
    bin_widths = jnp.concatenate(
        [jnp.full((1, 1), MIN_VAL, jnp.float32), bin_widths], axis=1)    # pad (1,0)
    bin_edges = jnp.cumsum(bin_widths, axis=1)                           # (1, n_bins+1)
    centers = 0.5 * (bin_edges[:, :-1] + bin_edges[:, 1:])               # (1, n_bins)

    # 5) fold conv3x3 -> query dot-product -> conv_out into one affine map
    #    (no nonlinearity between them in the reference module), transposed so bins
    #    sit on sublanes, with the bias folded into column 9 of W and -1e30 on the
    #    28 padded bin rows (so exp -> 0 exactly in f32).
    qT = params["queries"].T
    wq = qT @ params["wc"]                                               # (128, 100)
    w9 = (params["w3"] @ wq).T                                           # (100, 9)
    b1 = (params["b3"] @ wq + params["bc"]).T                            # (100, 1)
    w_all = jnp.zeros((NB_PAD, KDIM), jnp.float32)
    w_all = w_all.at[:N_BINS, :9].set(w9)
    w_all = w_all.at[:N_BINS, 9].set(b1[:, 0])                           # folded bias
    w_all = w_all.at[N_BINS:, 9].set(-1e30)                              # dead bins

    # MXU softmax-reduction matrix: row 0 = centers (0 on padded bins), row 1 = ones.
    cmat = jnp.zeros((8, NB_PAD), jnp.float32)
    cmat = cmat.at[0, :N_BINS].set(centers[0])
    cmat = cmat.at[1, :].set(1.0)

    # 6) im2col with pixels on the lane axis: (16, HW) = 9 shifted images (zero-padded
    #    3x3 conv taps) + ones row (bias) + 6 zero rows for a clean K=16 contraction.
    # TODO(synk): could be built in-kernel with pltpu.roll + edge masks to drop the
    # ~100 KB HBM round trip; kept in XLA since the arrays are tiny.
    xpad = jnp.pad(img, ((1, 1), (1, 1)))
    rows = [xpad[dh:dh + hs, dw:dw + ws].reshape(-1)
            for dh in range(3) for dw in range(3)]
    rows.append(jnp.ones((hs * ws,), jnp.float32))                       # bias lane
    xcolT = jnp.stack(rows, axis=0)                                      # (10, HW)
    xcolT = jnp.pad(xcolT, ((0, KDIM - 10), (0, 0)))                     # (16, HW)

    # 7) fused hot path in Pallas (grid=1 by default; set num_tiles=2 to benchmark
    #    the two-TensorCore split on v7x).
    pred_flat = fused_bins_pred(xcolT, w_all, cmat, num_tiles=num_tiles)
    pred = pred_flat.reshape(1, 1, hs, ws)

    return bin_edges, pred


# --------------------------------------------------------------------------
# Deterministic parameter init (synthetic; shapes follow the module's __init__)
# --------------------------------------------------------------------------
def init_params(key):
    ks = jax.random.split(key, 10)
    s = 0.05
    return {
        "dpt_w": s * jax.random.normal(ks[0], (3, 1), jnp.float32),
        "dpt_b": jnp.zeros((1, 1), jnp.float32),
        "wp": s * jax.random.normal(ks[1], (PATCH * PATCH, EMB), jnp.float32),
        "bp": jnp.zeros((EMB,), jnp.float32),
        "r_w1": s * jax.random.normal(ks[2], (EMB, 256), jnp.float32),
        "r_b1": jnp.zeros((256,), jnp.float32),
        "r_w2": s * jax.random.normal(ks[3], (256, 256), jnp.float32),
        "r_b2": jnp.zeros((256,), jnp.float32),
        "r_w3": s * jax.random.normal(ks[4], (256, N_BINS), jnp.float32),
        "r_b3": jnp.zeros((N_BINS,), jnp.float32),
        # conv3x3 (1 -> 128) in im2col form (9 taps)
        "w3": s * jax.random.normal(ks[5], (9, EMB), jnp.float32),
        "b3": s * jax.random.normal(ks[6], (1, EMB), jnp.float32),
        "queries": s * jax.random.normal(ks[7], (EMB, EMB), jnp.float32),
        # conv_out 1x1: 128 -> n_bins
        "wc": s * jax.random.normal(ks[8], (EMB, N_BINS), jnp.float32),
        "bc": jnp.zeros((1, N_BINS), jnp.float32),
    }


if __name__ == "__main__":
    key = jax.random.PRNGKey(0)
    kx, kp = jax.random.split(key)
    x = jax.random.normal(kx, (1, 3, 16, 16), jnp.float32)   # NCHW input image
    params = init_params(kp)

    fwd = jax.jit(functools.partial(dpt_bins_forward, hs=32, ws=48, num_tiles=1))
    bin_edges, pred = fwd(x, params)
    jax.block_until_ready((bin_edges, pred))

    assert bin_edges.shape == (1, N_BINS + 1)
    assert pred.shape == (1, 1, 32, 48)
    assert bool(jnp.all(jnp.isfinite(bin_edges))) and bool(jnp.all(jnp.isfinite(pred)))
    print("KERNEL_OK")
</pallas_src>

<mosaic_0001>
module attributes {stable_mosaic.version = 11 : i64} {
  func.func @_bins_pred_kernel(%arg0: i32, %arg1: memref<16x1536xf32, #tpu.memory_space<vmem>>, %arg2: memref<128x16xf32, #tpu.memory_space<vmem>>, %arg3: memref<8x128xf32, #tpu.memory_space<vmem>>, %arg4: memref<1x1536xf32, #tpu.memory_space<vmem>>) attributes {dimension_semantics = [#tpu.dimension_semantics<parallel>], iteration_bounds = array<i64: 1>, scalar_prefetch = 0 : i64, scratch_operands = 0 : i64, tpu.core_type = #tpu.core_type<tc>, window_params = [{transform_indices = @transform_0, window_bounds = array<i64: 16, 1536>}, {pipeline_mode = #tpu.pipeline_mode<synchronous>, transform_indices = @transform_1, window_bounds = array<i64: 128, 16>}, {pipeline_mode = #tpu.pipeline_mode<synchronous>, transform_indices = @transform_2, window_bounds = array<i64: 8, 128>}, {transform_indices = @transform_3, window_bounds = array<i64: 1, 1536>}]} {
    %c0 = arith.constant 0 : index
    %c0_0 = arith.constant 0 : index
    %0 = vector.load %arg2[%c0, %c0_0] : memref<128x16xf32, #tpu.memory_space<vmem>>, vector<128x16xf32>
    %c0_1 = arith.constant 0 : index
    %c0_2 = arith.constant 0 : index
    %1 = vector.load %arg1[%c0_1, %c0_2] : memref<16x1536xf32, #tpu.memory_space<vmem>>, vector<16x1536xf32>
    %cst = arith.constant dense<0.000000e+00> : vector<128x1536xf32>
    %2 = tpu.matmul %0, %1, %cst {dimension_numbers = #tpu.dot_dimension_numbers<[1], [0], [0], [1], [0, 0, 1, 1], [], []>} : vector<128x16xf32>, vector<16x1536xf32>, vector<128x1536xf32> -> vector<128x1536xf32>
    %cst_3 = arith.constant dense<0xFF800000> : vector<1536xf32>
    %3 = vector.multi_reduction <maximumf>, %2, %cst_3 [0] : vector<128x1536xf32> to vector<1536xf32>
    %4 = vector.shape_cast %3 : vector<1536xf32> to vector<1x1536xf32>
    %5 = vector.broadcast %4 : vector<1x1536xf32> to vector<128x1536xf32>
    %6 = arith.subf %2, %5 : vector<128x1536xf32>
    %7 = math.exp %6 : vector<128x1536xf32>
    %c0_4 = arith.constant 0 : index
    %c0_5 = arith.constant 0 : index
    %8 = vector.load %arg3[%c0_4, %c0_5] : memref<8x128xf32, #tpu.memory_space<vmem>>, vector<8x128xf32>
    %cst_6 = arith.constant dense<0.000000e+00> : vector<8x1536xf32>
    %9 = tpu.matmul %8, %7, %cst_6 {dimension_numbers = #tpu.dot_dimension_numbers<[1], [0], [0], [1], [0, 0, 1, 1], [], []>} : vector<8x128xf32>, vector<128x1536xf32>, vector<8x1536xf32> -> vector<8x1536xf32>
    %10 = vector.extract_strided_slice %9 {offsets = [0, 0], sizes = [1, 1536], strides = [1, 1]} : vector<8x1536xf32> to vector<1x1536xf32>
    %11 = vector.extract_strided_slice %9 {offsets = [1, 0], sizes = [1, 1536], strides = [1, 1]} : vector<8x1536xf32> to vector<1x1536xf32>
    %12 = tpu.reciprocal %11 : vector<1x1536xf32> -> vector<1x1536xf32>
    %13 = arith.mulf %10, %12 : vector<1x1536xf32>
    %c0_7 = arith.constant 0 : index
    %c0_8 = arith.constant 0 : index
    %14 = vector.load %arg4[%c0_7, %c0_8] : memref<1x1536xf32, #tpu.memory_space<vmem>>, vector<1x1536xf32>
    tpu.vector_store %arg4[%c0_7, %c0_8], %13 {strides = array<i32>} : memref<1x1536xf32, #tpu.memory_space<vmem>>, vector<1x1536xf32>,
    return
  }
  func.func @transform_0(%arg0: i32) -> (i32, i32) {
    %c0_i32 = arith.constant 0 : i32
    %c0_i32_0 = arith.constant 0 : i32
    return %c0_i32, %arg0 : i32, i32
  }
  func.func @transform_1(%arg0: i32) -> (i32, i32) {
    %c0_i32 = arith.constant 0 : i32
    %c0_i32_0 = arith.constant 0 : i32
    %c0_i32_1 = arith.constant 0 : i32
    return %c0_i32, %c0_i32_0 : i32, i32
  }
  func.func @transform_2(%arg0: i32) -> (i32, i32) {
    %c0_i32 = arith.constant 0 : i32
    %c0_i32_0 = arith.constant 0 : i32
    %c0_i32_1 = arith.constant 0 : i32
    return %c0_i32, %c0_i32_0 : i32, i32
  }
  func.func @transform_3(%arg0: i32) -> (i32, i32) {
    %c0_i32 = arith.constant 0 : i32
    %c0_i32_0 = arith.constant 0 : i32
    return %c0_i32, %arg0 : i32, i32
  }
}

</mosaic_0001>

<llo_original>
// kernel: squeeze.9
$region0: #{squeeze.9}
  %s0 = inlined_call_operand.vmem [shape: bf16[32,48], index: 0, kind: input, shape index: {}]
  %s1 = inlined_call_operand.vmem [shape: bf16[2,16,3,16], index: 1, kind: output, shape index: {}]
  $region1: #{squeeze.9} parent=0
    #allocation0 [shape = 'u8[196608]{0}', space=vmem, size = 0x30000, scoped, tag = 'scoped mem for output reshape']
    #allocation1 [shape = 'u8[24576]{0}', space=vmem, size = 0x6000, scoped, tag = 'scoped mem for input reshape']
    %s3 = smul.u32 4, 2
    %s4 = sshll.u32 1, %s3
    %s5 = ssub.s32 %s4, 1
    %s6 = smul.addr 4, 5
    %s7 = scalar_lea.vmem %s0, %s6
    %s8 = sshrl.u32 %s5, 1
    %s9 = sor.u32 %s5, %s8
    %s10 = sand.u32 %s9, 85
    %s11 = sshrl.u32 %s10, 1
    %s12 = sor.u32 %s10, %s11
    %s13 = sand.u32 51, %s12
    %s14 = sshrl.u32 %s13, 2
    %s15 = sor.u32 %s13, %s14
    %s16 = sand.u32 15, %s15
    %v17 = vld [vmem:[%s7] sm:%s16]
    %v18 = vunpack.c.l.bf16 %v17
    %v19 = vunpack.c.h.bf16 %v17
    %s20 = scalar_lea.vmem [#allocation1], 40
    %21 = vst [vmem:[%s20] sm:%s5] %v18
    %s22 = smul.addr 4, 4
    %s23 = scalar_lea.vmem %s0, %s22
    %s24 = sshrl.u32 %s5, 1
    %s25 = sor.u32 %s5, %s24
    %s26 = sand.u32 %s25, 85
    %s27 = sshrl.u32 %s26, 1
    %s28 = sor.u32 %s26, %s27
    %s29 = sand.u32 51, %s28
    %s30 = sshrl.u32 %s29, 2
    %s31 = sor.u32 %s29, %s30
    %s32 = sand.u32 15, %s31
    %v33 = vld [vmem:[%s23] sm:%s32]
    %v34 = vunpack.c.l.bf16 %v33
    %v35 = vunpack.c.h.bf16 %v33
    %s36 = scalar_lea.vmem [#allocation1], 32
    %37 = vst [vmem:[%s36] sm:%s5] %v34
    %s38 = smul.addr 4, 3
    %s39 = scalar_lea.vmem %s0, %s38
    %s40 = sshrl.u32 %s5, 1
    %s41 = sor.u32 %s5, %s40
    %s42 = sand.u32 %s41, 85
    %s43 = sshrl.u32 %s42, 1
    %s44 = sor.u32 %s42, %s43
    %s45 = sand.u32 51, %s44
    %s46 = sshrl.u32 %s45, 2
    %s47 = sor.u32 %s45, %s46
    %s48 = sand.u32 15, %s47
    %v49 = vld [vmem:[%s39] sm:%s48]
    %v50 = vunpack.c.l.bf16 %v49
    %v51 = vunpack.c.h.bf16 %v49
    %s52 = scalar_lea.vmem [#allocation1], 24
    %53 = vst [vmem:[%s52] sm:%s5] %v50
    %s54 = smul.addr 4, 2
    %s55 = scalar_lea.vmem %s0, %s54
    %s56 = sshrl.u32 %s5, 1
    %s57 = sor.u32 %s5, %s56
    %s58 = sand.u32 %s57, 85
    %s59 = sshrl.u32 %s58, 1
    %s60 = sor.u32 %s58, %s59
    %s61 = sand.u32 51, %s60
    %s62 = sshrl.u32 %s61, 2
    %s63 = sor.u32 %s61, %s62
    %s64 = sand.u32 15, %s63
    %v65 = vld [vmem:[%s55] sm:%s64]
    %v66 = vunpack.c.l.bf16 %v65
    %v67 = vunpack.c.h.bf16 %v65
    %s68 = scalar_lea.vmem [#allocation1], 16
    %69 = vst [vmem:[%s68] sm:%s5] %v66
    %s70 = scalar_lea.vmem %s0, 4
    %s71 = sshrl.u32 %s5, 1
    %s72 = sor.u32 %s5, %s71
    %s73 = sand.u32 %s72, 85
    %s74 = sshrl.u32 %s73, 1
    %s75 = sor.u32 %s73, %s74
    %s76 = sand.u32 51, %s75
    %s77 = sshrl.u32 %s76, 2
    %s78 = sor.u32 %s76, %s77
    %s79 = sand.u32 15, %s78
    %v80 = vld [vmem:[%s70] sm:%s79]
    %v81 = vunpack.c.l.bf16 %v80
    %v82 = vunpack.c.h.bf16 %v80
    %s83 = scalar_lea.vmem [#allocation1], 8
    %84 = vst [vmem:[%s83] sm:%s5] %v81
    %s85 = sshrl.u32 %s5, 1
    %s86 = sor.u32 %s5, %s85
    %s87 = sand.u32 %s86, 85
    %s88 = sshrl.u32 %s87, 1
    %s89 = sor.u32 %s87, %s88
    %s90 = sand.u32 51, %s89
    %s91 = sshrl.u32 %s90, 2
    %s92 = sor.u32 %s90, %s91
    %s93 = sand.u32 15, %s92
    %v94 = vld [vmem:[%s0] sm:%s93]
    %v95 = vunpack.c.l.bf16 %v94
    %v96 = vunpack.c.h.bf16 %v94
    %97 = vst [vmem:[#allocation1] sm:%s5] %v95
    %v98 = vld [vmem:[#allocation1] sm:$0xff]
    %vm99 = vcmask 130048
    %100 = vst.msk [vmem:[#allocation0] ss:$8 sm:$0xf] %vm99, %v98
    %101 = vst.msk [vmem:[#allocation0] ss:$8 sm:$0xf0] %vm99, %v98
    %s102 = scalar_lea.vmem [#allocation1], 8
    %v103 = vld [vmem:[%s102] sm:$0xff]
    %vm104 = vcmask 130048
    %s105 = scalar_lea.vmem [#allocation0], 64
    %106 = vst.msk [vmem:[%s105] ss:$8 sm:$0xf] %vm104, %v103
    %s107 = scalar_lea.vmem [#allocation0], 64
    %108 = vst.msk [vmem:[%s107] ss:$8 sm:$0xf0] %vm104, %v103
    %s109 = scalar_lea.vmem [#allocation1], 16
    %v110 = vld [vmem:[%s109] sm:$0xff]
    %vm111 = vcmask 130048
    %s112 = scalar_lea.vmem [#allocation0], 128
    %113 = vst.msk [vmem:[%s112] ss:$8 sm:$0xf] %vm111, %v110
    %s114 = scalar_lea.vmem [#allocation0], 128
    %115 = vst.msk [vmem:[%s114] ss:$8 sm:$0xf0] %vm111, %v110
    %s116 = scalar_lea.vmem [#allocation1], 24
    %v117 = vld [vmem:[%s116] sm:$0xff]
    %vm118 = vcmask 130048
    %s119 = scalar_lea.vmem [#allocation0], 192
    %120 = vst.msk [vmem:[%s119] ss:$8 sm:$0xf] %vm118, %v117
    %s121 = scalar_lea.vmem [#allocation0], 192
    %122 = vst.msk [vmem:[%s121] ss:$8 sm:$0xf0] %vm118, %v117
    %s123 = scalar_lea.vmem [#allocation1], 32
    %v124 = vld [vmem:[%s123] sm:$0xff]
    %vm125 = vcmask 130048
    %s126 = scalar_lea.vmem [#allocation0], 256
    %127 = vst.msk [vmem:[%s126] ss:$8 sm:$0xf] %vm125, %v124
    %s128 = scalar_lea.vmem [#allocation0], 256
    %129 = vst.msk [vmem:[%s128] ss:$8 sm:$0xf0] %vm125, %v124
    %s130 = scalar_lea.vmem [#allocation1], 40
    %v131 = vld [vmem:[%s130] sm:$0xff]
    %vm132 = vcmask 130048
    %s133 = scalar_lea.vmem [#allocation0], 320
    %134 = vst.msk [vmem:[%s133] ss:$8 sm:$0xf] %vm132, %v131
    %s135 = scalar_lea.vmem [#allocation0], 320
    %136 = vst.msk [vmem:[%s135] ss:$8 sm:$0xf0] %vm132, %v131
    %v137 = vld [vmem:[#allocation1] sm:$0xff]
    %138 = vrot.lane.b32.xlu0 %v137, 112
    %v139 = vpop.permute.xlu0 %138
    %vm140 = vcmask 130048
    %s141 = scalar_lea.vmem [#allocation0], 1
    %142 = vst.msk [vmem:[%s141] ss:$8 sm:$0xf] %vm140, %v139
    %s143 = scalar_lea.vmem [#allocation0], 1
    %144 = vst.msk [vmem:[%s143] ss:$8 sm:$0xf0] %vm140, %v139
    %s145 = scalar_lea.vmem [#allocation1], 8
    %v146 = vld [vmem:[%s145] sm:$0xff]
    %147 = vrot.lane.b32.xlu0 %v146, 112
    %v148 = vpop.permute.xlu0 %147
    %vm149 = vcmask 130048
    %s150 = scalar_lea.vmem [#allocation0], 65
    %151 = vst.msk [vmem:[%s150] ss:$8 sm:$0xf] %vm149, %v148
    %s152 = scalar_lea.vmem [#allocation0], 65
    %153 = vst.msk [vmem:[%s152] ss:$8 sm:$0xf0] %vm149, %v148
    %s154 = scalar_lea.vmem [#allocation1], 16
    %v155 = vld [vmem:[%s154] sm:$0xff]
    %156 = vrot.lane.b32.xlu0 %v155, 112
    %v157 = vpop.permute.xlu0 %156
    %vm158 = vcmask 130048
    %s159 = scalar_lea.vmem [#allocation0], 129
    %160 = vst.msk [vmem:[%s159] ss:$8 sm:$0xf] %vm158, %v157
    %s161 = scalar_lea.vmem [#allocation0], 129
    %162 = vst.msk [vmem:[%s161] ss:$8 sm:$0xf0] %vm158, %v157
    %s163 = scalar_lea.vmem [#allocation1], 24
    %v164 = vld [vmem:[%s163] sm:$0xff]
    %165 = vrot.lane.b32.xlu0 %v164, 112
    %v166 = vpop.permute.xlu0 %165
    %vm167 = vcmask 130048
    %s168 = scalar_lea.vmem [#allocation0], 193
    %169 = vst.msk [vmem:[%s168] ss:$8 sm:$0xf] %vm167, %v166
    %s170 = scalar_lea.vmem [#allocation0], 193
    %171 = vst.msk [vmem:[%s170] ss:$8 sm:$0xf0] %vm167, %v166
    %s172 = scalar_lea.vmem [#allocation1], 32
    %v173 = vld [vmem:[%s172] sm:$0xff]
    %174 = vrot.lane.b32.xlu0 %v173, 112
    %v175 = vpop.permute.xlu0 %174
    %vm176 = vcmask 130048
    %s177 = scalar_lea.vmem [#allocation0], 257
    %178 = vst.msk [vmem:[%s177] ss:$8 sm:$0xf] %vm176, %v175
    %s179 = scalar_lea.vmem [#allocation0], 257
    %180 = vst.msk [vmem:[%s179] ss:$8 sm:$0xf0] %vm176, %v175
    %s181 = scalar_lea.vmem [#allocation1], 40
    %v182 = vld [vmem:[%s181] sm:$0xff]
    %183 = vrot.lane.b32.xlu0 %v182, 112
    %v184 = vpop.permute.xlu0 %183
    %vm185 = vcmask 130048
    %s186 = scalar_lea.vmem [#allocation0], 321
    %187 = vst.msk [vmem:[%s186] ss:$8 sm:$0xf] %vm185, %v184
    %s188 = scalar_lea.vmem [#allocation0], 321
    %189 = vst.msk [vmem:[%s188] ss:$8 sm:$0xf0] %vm185, %v184
    %s191 = smul.u32 1, 2
    %s192 = sshll.u32 1, %s191
    %s193 = ssub.s32 %s192, 1
    %s194 = sshrl.u32 %s191, 1
    %v195 = vld [vmem:[#allocation0] sm:%s193]
    %v196 = vpack.c.bf16 0.0, %v195
    %s197 = sshll.u32 1, %s194
    %s198 = ssub.s32 %s197, 1
    %199 = vst [vmem:[%s1] sm:%s198] %v196
    %s200 = scalar_lea.vmem [#allocation0], 8
    %v201 = vld [vmem:[%s200] sm:%s193]
    %v202 = vpack.c.bf16 0.0, %v201
    %s203 = sshll.u32 1, %s194
    %s204 = ssub.s32 %s203, 1
    %s205 = scalar_lea.vmem %s1, 1
    %206 = vst [vmem:[%s205] sm:%s204] %v202
    %s207 = scalar_lea.vmem [#allocation0], 16
    %v208 = vld [vmem:[%s207] sm:%s193]
    %v209 = vpack.c.bf16 0.0, %v208
    %s210 = sshll.u32 1, %s194
    %s211 = ssub.s32 %s210, 1
    %s212 = smul.addr 1, 2
    %s213 = scalar_lea.vmem %s1, %s212
    %214 = vst [vmem:[%s213] sm:%s211] %v209
    %s215 = scalar_lea.vmem [#allocation0], 24
    %v216 = vld [vmem:[%s215] sm:%s193]
    %v217 = vpack.c.bf16 0.0, %v216
    %s218 = sshll.u32 1, %s194
    %s219 = ssub.s32 %s218, 1
    %s220 = smul.addr 1, 3
    %s221 = scalar_lea.vmem %s1, %s220
    %222 = vst [vmem:[%s221] sm:%s219] %v217
    %s223 = scalar_lea.vmem [#allocation0], 32
    %v224 = vld [vmem:[%s223] sm:%s193]
    %v225 = vpack.c.bf16 0.0, %v224
    %s226 = sshll.u32 1, %s194
    %s227 = ssub.s32 %s226, 1
    %s228 = smul.addr 1, 4
    %s229 = scalar_lea.vmem %s1, %s228
    %230 = vst [vmem:[%s229] sm:%s227] %v225
    %s231 = scalar_lea.vmem [#allocation0], 40
    %v232 = vld [vmem:[%s231] sm:%s193]
    %v233 = vpack.c.bf16 0.0, %v232
    %s234 = sshll.u32 1, %s194
    %s235 = ssub.s32 %s234, 1
    %s236 = smul.addr 1, 5
    %s237 = scalar_lea.vmem %s1, %s236
    %238 = vst [vmem:[%s237] sm:%s235] %v233
    %s239 = scalar_lea.vmem [#allocation0], 48
    %v240 = vld [vmem:[%s239] sm:%s193]
    %v241 = vpack.c.bf16 0.0, %v240
    %s242 = sshll.u32 1, %s194
    %s243 = ssub.s32 %s242, 1
    %s244 = smul.addr 1, 6
    %s245 = scalar_lea.vmem %s1, %s244
    %246 = vst [vmem:[%s245] sm:%s243] %v241
    %s247 = scalar_lea.vmem [#allocation0], 56
    %v248 = vld [vmem:[%s247] sm:%s193]
    %v249 = vpack.c.bf16 0.0, %v248
    %s250 = sshll.u32 1, %s194
    %s251 = ssub.s32 %s250, 1
    %s252 = smul.addr 1, 7
    %s253 = scalar_lea.vmem %s1, %s252
    %254 = vst [vmem:[%s253] sm:%s251] %v249
    %s255 = scalar_lea.vmem [#allocation0], 64
    %v256 = vld [vmem:[%s255] sm:%s193]
    %v257 = vpack.c.bf16 0.0, %v256
    %s258 = sshll.u32 1, %s194
    %s259 = ssub.s32 %s258, 1
    %s260 = smul.addr 1, 8
    %s261 = scalar_lea.vmem %s1, %s260
    %262 = vst [vmem:[%s261] sm:%s259] %v257
    %s263 = scalar_lea.vmem [#allocation0], 72
    %v264 = vld [vmem:[%s263] sm:%s193]
    %v265 = vpack.c.bf16 0.0, %v264
    %s266 = sshll.u32 1, %s194
    %s267 = ssub.s32 %s266, 1
    %s268 = smul.addr 1, 9
    %s269 = scalar_lea.vmem %s1, %s268
    %270 = vst [vmem:[%s269] sm:%s267] %v265
    %s271 = scalar_lea.vmem [#allocation0], 80
    %v272 = vld [vmem:[%s271] sm:%s193]
    %v273 = vpack.c.bf16 0.0, %v272
    %s274 = sshll.u32 1, %s194
    %s275 = ssub.s32 %s274, 1
    %s276 = smul.addr 1, 10
    %s277 = scalar_lea.vmem %s1, %s276
    %278 = vst [vmem:[%s277] sm:%s275] %v273
    %s279 = scalar_lea.vmem [#allocation0], 88
    %v280 = vld [vmem:[%s279] sm:%s193]
    %v281 = vpack.c.bf16 0.0, %v280
    %s282 = sshll.u32 1, %s194
    %s283 = ssub.s32 %s282, 1
    %s284 = smul.addr 1, 11
    %s285 = scalar_lea.vmem %s1, %s284
    %286 = vst [vmem:[%s285] sm:%s283] %v281
    %s287 = scalar_lea.vmem [#allocation0], 96
    %v288 = vld [vmem:[%s287] sm:%s193]
    %v289 = vpack.c.bf16 0.0, %v288
    %s290 = sshll.u32 1, %s194
    %s291 = ssub.s32 %s290, 1
    %s292 = smul.addr 1, 12
    %s293 = scalar_lea.vmem %s1, %s292
    %294 = vst [vmem:[%s293] sm:%s291] %v289
    %s295 = scalar_lea.vmem [#allocation0], 104
    %v296 = vld [vmem:[%s295] sm:%s193]
    %v297 = vpack.c.bf16 0.0, %v296
    %s298 = sshll.u32 1, %s194
    %s299 = ssub.s32 %s298, 1
    %s300 = smul.addr 1, 13
    %s301 = scalar_lea.vmem %s1, %s300
    %302 = vst [vmem:[%s301] sm:%s299] %v297
    %s303 = scalar_lea.vmem [#allocation0], 112
    %v304 = vld [vmem:[%s303] sm:%s193]
    %v305 = vpack.c.bf16 0.0, %v304
    %s306 = sshll.u32 1, %s194
    %s307 = ssub.s32 %s306, 1
    %s308 = smul.addr 1, 14
    %s309 = scalar_lea.vmem %s1, %s308
    %310 = vst [vmem:[%s309] sm:%s307] %v305
    %s311 = scalar_lea.vmem [#allocation0], 120
    %v312 = vld [vmem:[%s311] sm:%s193]
    %v313 = vpack.c.bf16 0.0, %v312
    %s314 = sshll.u32 1, %s194
    %s315 = ssub.s32 %s314, 1
    %s316 = smul.addr 1, 15
    %s317 = scalar_lea.vmem %s1, %s316
    %318 = vst [vmem:[%s317] sm:%s315] %v313
    %s319 = scalar_lea.vmem [#allocation0], 128
    %v320 = vld [vmem:[%s319] sm:%s193]
    %v321 = vpack.c.bf16 0.0, %v320
    %s322 = sshll.u32 1, %s194
    %s323 = ssub.s32 %s322, 1
    %s324 = smul.addr 1, 16
    %s325 = scalar_lea.vmem %s1, %s324
    %326 = vst [vmem:[%s325] sm:%s323] %v321
    %s327 = scalar_lea.vmem [#allocation0], 136
    %v328 = vld [vmem:[%s327] sm:%s193]
    %v329 = vpack.c.bf16 0.0, %v328
    %s330 = sshll.u32 1, %s194
    %s331 = ssub.s32 %s330, 1
    %s332 = smul.addr 1, 17
    %s333 = scalar_lea.vmem %s1, %s332
    %334 = vst [vmem:[%s333] sm:%s331] %v329
    %s335 = scalar_lea.vmem [#allocation0], 144
    %v336 = vld [vmem:[%s335] sm:%s193]
    %v337 = vpack.c.bf16 0.0, %v336
    %s338 = sshll.u32 1, %s194
    %s339 = ssub.s32 %s338, 1
    %s340 = smul.addr 1, 18
    %s341 = scalar_lea.vmem %s1, %s340
    %342 = vst [vmem:[%s341] sm:%s339] %v337
    %s343 = scalar_lea.vmem [#allocation0], 152
    %v344 = vld [vmem:[%s343] sm:%s193]
    %v345 = vpack.c.bf16 0.0, %v344
    %s346 = sshll.u32 1, %s194
    %s347 = ssub.s32 %s346, 1
    %s348 = smul.addr 1, 19
    %s349 = scalar_lea.vmem %s1, %s348
    %350 = vst [vmem:[%s349] sm:%s347] %v345
    %s351 = scalar_lea.vmem [#allocation0], 160
    %v352 = vld [vmem:[%s351] sm:%s193]
    %v353 = vpack.c.bf16 0.0, %v352
    %s354 = sshll.u32 1, %s194
    %s355 = ssub.s32 %s354, 1
    %s356 = smul.addr 1, 20
    %s357 = scalar_lea.vmem %s1, %s356
    %358 = vst [vmem:[%s357] sm:%s355] %v353
    %s359 = scalar_lea.vmem [#allocation0], 168
    %v360 = vld [vmem:[%s359] sm:%s193]
    %v361 = vpack.c.bf16 0.0, %v360
    %s362 = sshll.u32 1, %s194
    %s363 = ssub.s32 %s362, 1
    %s364 = smul.addr 1, 21
    %s365 = scalar_lea.vmem %s1, %s364
    %366 = vst [vmem:[%s365] sm:%s363] %v361
    %s367 = scalar_lea.vmem [#allocation0], 176
    %v368 = vld [vmem:[%s367] sm:%s193]
    %v369 = vpack.c.bf16 0.0, %v368
    %s370 = sshll.u32 1, %s194
    %s371 = ssub.s32 %s370, 1
    %s372 = smul.addr 1, 22
    %s373 = scalar_lea.vmem %s1, %s372
    %374 = vst [vmem:[%s373] sm:%s371] %v369
    %s375 = scalar_lea.vmem [#allocation0], 184
    %v376 = vld [vmem:[%s375] sm:%s193]
    %v377 = vpack.c.bf16 0.0, %v376
    %s378 = sshll.u32 1, %s194
    %s379 = ssub.s32 %s378, 1
    %s380 = smul.addr 1, 23
    %s381 = scalar_lea.vmem %s1, %s380
    %382 = vst [vmem:[%s381] sm:%s379] %v377
    %s383 = scalar_lea.vmem [#allocation0], 192
    %v384 = vld [vmem:[%s383] sm:%s193]
    %v385 = vpack.c.bf16 0.0, %v384
    %s386 = sshll.u32 1, %s194
    %s387 = ssub.s32 %s386, 1
    %s388 = smul.addr 1, 24
    %s389 = scalar_lea.vmem %s1, %s388
    %390 = vst [vmem:[%s389] sm:%s387] %v385
    %s391 = scalar_lea.vmem [#allocation0], 200
    %v392 = vld [vmem:[%s391] sm:%s193]
    %v393 = vpack.c.bf16 0.0, %v392
    %s394 = sshll.u32 1, %s194
    %s395 = ssub.s32 %s394, 1
    %s396 = smul.addr 1, 25
    %s397 = scalar_lea.vmem %s1, %s396
    %398 = vst [vmem:[%s397] sm:%s395] %v393
    %s399 = scalar_lea.vmem [#allocation0], 208
    %v400 = vld [vmem:[%s399] sm:%s193]
    %v401 = vpack.c.bf16 0.0, %v400
    %s402 = sshll.u32 1, %s194
    %s403 = ssub.s32 %s402, 1
    %s404 = smul.addr 1, 26
    %s405 = scalar_lea.vmem %s1, %s404
    %406 = vst [vmem:[%s405] sm:%s403] %v401
    %s407 = scalar_lea.vmem [#allocation0], 216
    %v408 = vld [vmem:[%s407] sm:%s193]
    %v409 = vpack.c.bf16 0.0, %v408
    %s410 = sshll.u32 1, %s194
    %s411 = ssub.s32 %s410, 1
    %s412 = smul.addr 1, 27
    %s413 = scalar_lea.vmem %s1, %s412
    %414 = vst [vmem:[%s413] sm:%s411] %v409
    %s415 = scalar_lea.vmem [#allocation0], 224
    %v416 = vld [vmem:[%s415] sm:%s193]
    %v417 = vpack.c.bf16 0.0, %v416
    %s418 = sshll.u32 1, %s194
    %s419 = ssub.s32 %s418, 1
    %s420 = smul.addr 1, 28
    %s421 = scalar_lea.vmem %s1, %s420
    %422 = vst [vmem:[%s421] sm:%s419] %v417
    %s423 = scalar_lea.vmem [#allocation0], 232
    %v424 = vld [vmem:[%s423] sm:%s193]
    %v425 = vpack.c.bf16 0.0, %v424
    %s426 = sshll.u32 1, %s194
    %s427 = ssub.s32 %s426, 1
    %s428 = smul.addr 1, 29
    %s429 = scalar_lea.vmem %s1, %s428
    %430 = vst [vmem:[%s429] sm:%s427] %v425
    %s431 = scalar_lea.vmem [#allocation0], 240
    %v432 = vld [vmem:[%s431] sm:%s193]
    %v433 = vpack.c.bf16 0.0, %v432
    %s434 = sshll.u32 1, %s194
    %s435 = ssub.s32 %s434, 1
    %s436 = smul.addr 1, 30
    %s437 = scalar_lea.vmem %s1, %s436
    %438 = vst [vmem:[%s437] sm:%s435] %v433
    %s439 = scalar_lea.vmem [#allocation0], 248
    %v440 = vld [vmem:[%s439] sm:%s193]
    %v441 = vpack.c.bf16 0.0, %v440
    %s442 = sshll.u32 1, %s194
    %s443 = ssub.s32 %s442, 1
    %s444 = smul.addr 1, 31
    %s445 = scalar_lea.vmem %s1, %s444
    %446 = vst [vmem:[%s445] sm:%s443] %v441
    %s447 = scalar_lea.vmem [#allocation0], 256
    %v448 = vld [vmem:[%s447] sm:%s193]
    %v449 = vpack.c.bf16 0.0, %v448
    %s450 = sshll.u32 1, %s194
    %s451 = ssub.s32 %s450, 1
    %s452 = smul.addr 1, 32
    %s453 = scalar_lea.vmem %s1, %s452
    %454 = vst [vmem:[%s453] sm:%s451] %v449
    %s455 = scalar_lea.vmem [#allocation0], 264
    %v456 = vld [vmem:[%s455] sm:%s193]
    %v457 = vpack.c.bf16 0.0, %v456
    %s458 = sshll.u32 1, %s194
    %s459 = ssub.s32 %s458, 1
    %s460 = smul.addr 1, 33
    %s461 = scalar_lea.vmem %s1, %s460
    %462 = vst [vmem:[%s461] sm:%s459] %v457
    %s463 = scalar_lea.vmem [#allocation0], 272
    %v464 = vld [vmem:[%s463] sm:%s193]
    %v465 = vpack.c.bf16 0.0, %v464
    %s466 = sshll.u32 1, %s194
    %s467 = ssub.s32 %s466, 1
    %s468 = smul.addr 1, 34
    %s469 = scalar_lea.vmem %s1, %s468
    %470 = vst [vmem:[%s469] sm:%s467] %v465
    %s471 = scalar_lea.vmem [#allocation0], 280
    %v472 = vld [vmem:[%s471] sm:%s193]
    %v473 = vpack.c.bf16 0.0, %v472
    %s474 = sshll.u32 1, %s194
    %s475 = ssub.s32 %s474, 1
    %s476 = smul.addr 1, 35
    %s477 = scalar_lea.vmem %s1, %s476
    %478 = vst [vmem:[%s477] sm:%s475] %v473
    %s479 = scalar_lea.vmem [#allocation0], 288
    %v480 = vld [vmem:[%s479] sm:%s193]
    %v481 = vpack.c.bf16 0.0, %v480
    %s482 = sshll.u32 1, %s194
    %s483 = ssub.s32 %s482, 1
    %s484 = smul.addr 1, 36
    %s485 = scalar_lea.vmem %s1, %s484
    %486 = vst [vmem:[%s485] sm:%s483] %v481
    %s487 = scalar_lea.vmem [#allocation0], 296
    %v488 = vld [vmem:[%s487] sm:%s193]
    %v489 = vpack.c.bf16 0.0, %v488
    %s490 = sshll.u32 1, %s194
    %s491 = ssub.s32 %s490, 1
    %s492 = smul.addr 1, 37
    %s493 = scalar_lea.vmem %s1, %s492
    %494 = vst [vmem:[%s493] sm:%s491] %v489
    %s495 = scalar_lea.vmem [#allocation0], 304
    %v496 = vld [vmem:[%s495] sm:%s193]
    %v497 = vpack.c.bf16 0.0, %v496
    %s498 = sshll.u32 1, %s194
    %s499 = ssub.s32 %s498, 1
    %s500 = smul.addr 1, 38
    %s501 = scalar_lea.vmem %s1, %s500
    %502 = vst [vmem:[%s501] sm:%s499] %v497
    %s503 = scalar_lea.vmem [#allocation0], 312
    %v504 = vld [vmem:[%s503] sm:%s193]
    %v505 = vpack.c.bf16 0.0, %v504
    %s506 = sshll.u32 1, %s194
    %s507 = ssub.s32 %s506, 1
    %s508 = smul.addr 1, 39
    %s509 = scalar_lea.vmem %s1, %s508
    %510 = vst [vmem:[%s509] sm:%s507] %v505
    %s511 = scalar_lea.vmem [#allocation0], 320
    %v512 = vld [vmem:[%s511] sm:%s193]
    %v513 = vpack.c.bf16 0.0, %v512
    %s514 = sshll.u32 1, %s194
    %s515 = ssub.s32 %s514, 1
    %s516 = smul.addr 1, 40
    %s517 = scalar_lea.vmem %s1, %s516
    %518 = vst [vmem:[%s517] sm:%s515] %v513
    %s519 = scalar_lea.vmem [#allocation0], 328
    %v520 = vld [vmem:[%s519] sm:%s193]
    %v521 = vpack.c.bf16 0.0, %v520
    %s522 = sshll.u32 1, %s194
    %s523 = ssub.s32 %s522, 1
    %s524 = smul.addr 1, 41
    %s525 = scalar_lea.vmem %s1, %s524
    %526 = vst [vmem:[%s525] sm:%s523] %v521
    %s527 = scalar_lea.vmem [#allocation0], 336
    %v528 = vld [vmem:[%s527] sm:%s193]
    %v529 = vpack.c.bf16 0.0, %v528
    %s530 = sshll.u32 1, %s194
    %s531 = ssub.s32 %s530, 1
    %s532 = smul.addr 1, 42
    %s533 = scalar_lea.vmem %s1, %s532
    %534 = vst [vmem:[%s533] sm:%s531] %v529
    %s535 = scalar_lea.vmem [#allocation0], 344
    %v536 = vld [vmem:[%s535] sm:%s193]
    %v537 = vpack.c.bf16 0.0, %v536
    %s538 = sshll.u32 1, %s194
    %s539 = ssub.s32 %s538, 1
    %s540 = smul.addr 1, 43
    %s541 = scalar_lea.vmem %s1, %s540
    %542 = vst [vmem:[%s541] sm:%s539] %v537
    %s543 = scalar_lea.vmem [#allocation0], 352
    %v544 = vld [vmem:[%s543] sm:%s193]
    %v545 = vpack.c.bf16 0.0, %v544
    %s546 = sshll.u32 1, %s194
    %s547 = ssub.s32 %s546, 1
    %s548 = smul.addr 1, 44
    %s549 = scalar_lea.vmem %s1, %s548
    %550 = vst [vmem:[%s549] sm:%s547] %v545
    %s551 = scalar_lea.vmem [#allocation0], 360
    %v552 = vld [vmem:[%s551] sm:%s193]
    %v553 = vpack.c.bf16 0.0, %v552
    %s554 = sshll.u32 1, %s194
    %s555 = ssub.s32 %s554, 1
    %s556 = smul.addr 1, 45
    %s557 = scalar_lea.vmem %s1, %s556
    %558 = vst [vmem:[%s557] sm:%s555] %v553
    %s559 = scalar_lea.vmem [#allocation0], 368
    %v560 = vld [vmem:[%s559] sm:%s193]
    %v561 = vpack.c.bf16 0.0, %v560
    %s562 = sshll.u32 1, %s194
    %s563 = ssub.s32 %s562, 1
    %s564 = smul.addr 1, 46
    %s565 = scalar_lea.vmem %s1, %s564
    %566 = vst [vmem:[%s565] sm:%s563] %v561
    %s567 = scalar_lea.vmem [#allocation0], 376
    %v568 = vld [vmem:[%s567] sm:%s193]
    %v569 = vpack.c.bf16 0.0, %v568
    %s570 = sshll.u32 1, %s194
    %s571 = ssub.s32 %s570, 1
    %s572 = smul.addr 1, 47
    %s573 = scalar_lea.vmem %s1, %s572
    %574 = vst [vmem:[%s573] sm:%s571] %v569

// kernel: squeeze.11
$region0: #{squeeze.11}
  %s0 = inlined_call_operand.vmem [shape: f32[1536], index: 0, kind: input, shape index: {}]
  %s1 = inlined_call_operand.hbm [shape: f32[1,1,32,48], index: 1, kind: output, shape index: {}]
  $region1: #{squeeze.11} parent=0
    #allocation0 [shape = 'u8[16384]{0}', space=vmem, size = 0x4000, scoped, tag = 'operand span for operand 1']
    #allocation1 [shape = 's32[1]{0}', space=sflag, size = 0x4, scoped, tag = 'scoped memory for squeeze.11']
    %2 = vsyncpa [#allocation1], 0
    %v3 = vld [vmem:[%s0] ss:$3 sm:$0xf]
    %vm4 = vcmask 392192
    %5 = vst.msk [vmem:[#allocation0] ss:$8 sm:$0xf] %vm4, %v3
    %s6 = scalar_lea.vmem %s0, 1
    %v7 = vld [vmem:[%s6] ss:$3 sm:$0xf]
    %8 = vrot.lane.b32.xlu0 %v7, 112
    %v9 = vpop.permute.xlu0 %8
    %vm10 = vcmask 392192
    %s11 = scalar_lea.vmem [#allocation0], 3
    %12 = vst.msk [vmem:[%s11] ss:$8 sm:$0xf] %vm10, %v9
    %s13 = scalar_lea.vmem %s0, 2
    %v14 = vld [vmem:[%s13] ss:$3 sm:$0xf]
    %15 = vrot.lane.b32.xlu0 %v14, 96
    %v16 = vpop.permute.xlu0 %15
    %vm17 = vcmask 392192
    %s18 = scalar_lea.vmem [#allocation0], 6
    %19 = vst.msk [vmem:[%s18] ss:$8 sm:$0xf] %vm17, %v16
    %v20 = vld [vmem:[%s0] ss:$3 sm:$0xf]
    %21 = vrot.lane.b32.xlu0 %v20, 80
    %v22 = vpop.permute.xlu0 %21
    %vm23 = vcmask 392192
    %s24 = scalar_lea.vmem [#allocation0], 1
    %25 = vst.msk [vmem:[%s24] ss:$8 sm:$0xf] %vm23, %v22
    %s26 = scalar_lea.vmem %s0, 1
    %v27 = vld [vmem:[%s26] ss:$3 sm:$0xf]
    %28 = vrot.lane.b32.xlu0 %v27, 64
    %v29 = vpop.permute.xlu0 %28
    %vm30 = vcmask 392192
    %s31 = scalar_lea.vmem [#allocation0], 4
    %32 = vst.msk [vmem:[%s31] ss:$8 sm:$0xf] %vm30, %v29
    %s33 = scalar_lea.vmem %s0, 2
    %v34 = vld [vmem:[%s33] ss:$3 sm:$0xf]
    %35 = vrot.lane.b32.xlu0 %v34, 48
    %v36 = vpop.permute.xlu0 %35
    %vm37 = vcmask 392192
    %s38 = scalar_lea.vmem [#allocation0], 7
    %39 = vst.msk [vmem:[%s38] ss:$8 sm:$0xf] %vm37, %v36
    %v40 = vld [vmem:[%s0] ss:$3 sm:$0xf]
    %s41 = scalar_lea.vmem %s0, 1
    %v42 = vld [vmem:[%s41] ss:$3 sm:$0xf]
    %vm43 = vcmask 785408
    %v44 = vsel %vm43, %v42, %v40
    %45 = vrot.lane.b32.xlu0 %v44, 32
    %v46 = vpop.permute.xlu0 %45
    %vm47 = vcmask 261120
    %s48 = scalar_lea.vmem [#allocation0], 2
    %49 = vst.msk [vmem:[%s48] ss:$8 sm:$0xf] %vm47, %v46
    %vm50 = vcmask 392448
    %s51 = scalar_lea.vmem [#allocation0], 2
    %52 = vst.msk [vmem:[%s51] ss:$8 sm:$0xf] %vm50, %v46
    %s53 = scalar_lea.vmem %s0, 1
    %v54 = vld [vmem:[%s53] ss:$3 sm:$0xf]
    %s55 = scalar_lea.vmem %s0, 2
    %v56 = vld [vmem:[%s55] ss:$3 sm:$0xf]
    %vm57 = vcmask 916480
    %v58 = vsel %vm57, %v56, %v54
    %59 = vrot.lane.b32.xlu0 %v58, 16
    %v60 = vpop.permute.xlu0 %59
    %vm61 = vcmask 130048
    %s62 = scalar_lea.vmem [#allocation0], 5
    %63 = vst.msk [vmem:[%s62] ss:$8 sm:$0xf] %vm61, %v60
    %vm64 = vcmask 392320
    %s65 = scalar_lea.vmem [#allocation0], 5
    %66 = vst.msk [vmem:[%s65] ss:$8 sm:$0xf] %vm64, %v60
    %s68 = ssub.s32 512, 512
    %69 = vsyncadd [#allocation1], %s68
    %s71 = sshll.u32 [#allocation0], 4
    %s72 = int_to_ptr.vmem [resolvable:$true] %s71
    %74 = dma.vmem_to_hbm [thread:$0]  %s72, 512, %s1, [#allocation1]
    %75 = dma.done [#allocation1], 512
    %76 = vsyncpa [#allocation1], 1

// kernel: dpt_bins_forward.1
$region0: #{dpt_bins_forward.1}
  #allocation0 [shape = 'u32[]', space=smem, size = 0x4, offset = 0x4, fixed_abs, tag = 'smem constant byte address 0x4 - core index']
  #allocation1 [shape = 'u32[144,128]{1,0:T(1,128)}', space=vmem, size = 0x12000, scoped, tag = 'internal scratch']
  %s0 = inlined_call_operand.vmem [shape: f32[16,1536], index: 0, kind: input, shape index: {}]
  %s1 = inlined_call_operand.vmem [shape: f32[128,16], index: 1, kind: input, shape index: {}]
  %s2 = inlined_call_operand.vmem [shape: f32[8,128], index: 2, kind: input, shape index: {}]
  %s3 = inlined_call_operand.vmem [shape: f32[1,1536], index: 3, kind: output, shape index: {}]
  %s4 = sld [smem:[#allocation0]]
  $region22: #{dpt_bins_forward.1} parent=0
    _
  %s6 = ssub.s32 1, %s4
  %s7 = scalar_select 0, %s6, %s4
  // Predicated region
  $region2: #{dpt_bins_forward.1} parent=0 // pred_check
    _
  $region3: #{dpt_bins_forward.1} parent=0 // pred_check_branch
    %9 = sbr.rel (0) target = $region5
  $region4: #{dpt_bins_forward.1} parent=0 // pred_region
    _
  $region5: #{dpt_bins_forward.1} parent=0 // pred_fallthru
    _
  // Predicated region
  $region6: #{dpt_bins_forward.1} parent=0 // pred_check
    _
  $region7: #{dpt_bins_forward.1} parent=0 // pred_check_branch
    %11 = sbr.rel (0) target = $region9
  $region8: #{dpt_bins_forward.1} parent=0 // pred_region
    _
  $region9: #{dpt_bins_forward.1} parent=0 // pred_fallthru
    _
  // Predicated region
  $region10: #{dpt_bins_forward.1} parent=0 // pred_check
    _
  $region11: #{dpt_bins_forward.1} parent=0 // pred_check_branch
    %13 = sbr.rel (0) target = $region13
  $region12: #{dpt_bins_forward.1} parent=0 // pred_region
    _
  $region13: #{dpt_bins_forward.1} parent=0 // pred_fallthru
    _
  %v14 = vld [vmem:[%s1] sm:$0xff]
  %v15 = vld [vmem:[%s1 + $0x8] sm:$0xff]
  %v16 = vld [vmem:[%s1 + $0x10] sm:$0xff]
  %v17 = vld [vmem:[%s1 + $0x18] sm:$0xff]
  %v18 = vld [vmem:[%s1 + $0x20] sm:$0xff]
  %v19 = vld [vmem:[%s1 + $0x28] sm:$0xff]
  %v20 = vld [vmem:[%s1 + $0x30] sm:$0xff]
  %v21 = vld [vmem:[%s1 + $0x38] sm:$0xff]
  %v22 = vld [vmem:[%s1 + $0x40] sm:$0xff]
  %v23 = vld [vmem:[%s1 + $0x48] sm:$0xff]
  %v24 = vld [vmem:[%s1 + $0x50] sm:$0xff]
  %v25 = vld [vmem:[%s1 + $0x58] sm:$0xff]
  %v26 = vld [vmem:[%s1 + $0x60] sm:$0xff]
  %v27 = vld [vmem:[%s1 + $0x68] sm:$0xff]
  %v28 = vld [vmem:[%s1 + $0x70] sm:$0xff]
  %v29 = vld [vmem:[%s1 + $0x78] sm:$0xff]
  %v30 = vld [vmem:[%s0] sm:$0xff]
  %v31 = vld [vmem:[%s0 + $0x8] sm:$0xff]
  %v32 = vld [vmem:[%s0 + $0x10] sm:$0xff]
  %v33 = vld [vmem:[%s0 + $0x18] sm:$0xff]
  %v34 = vld [vmem:[%s0 + $0x20] sm:$0xff]
  %v35 = vld [vmem:[%s0 + $0x28] sm:$0xff]
  %v36 = vld [vmem:[%s0 + $0x30] sm:$0xff]
  %v37 = vld [vmem:[%s0 + $0x38] sm:$0xff]
  %v38 = vld [vmem:[%s0 + $0x40] sm:$0xff]
  %v39 = vld [vmem:[%s0 + $0x48] sm:$0xff]
  %v40 = vld [vmem:[%s0 + $0x50] sm:$0xff]
  %v41 = vld [vmem:[%s0 + $0x58] sm:$0xff]
  %v42 = vld [vmem:[%s0 + $0x60] sm:$0xff]
  %v43 = vld [vmem:[%s0 + $0x68] sm:$0xff]
  %v44 = vld [vmem:[%s0 + $0x70] sm:$0xff]
  %v45 = vld [vmem:[%s0 + $0x78] sm:$0xff]
  %v46 = vld [vmem:[%s0 + $0x80] sm:$0xff]
  %v47 = vld [vmem:[%s0 + $0x88] sm:$0xff]
  %v48 = vld [vmem:[%s0 + $0x90] sm:$0xff]
  %v49 = vld [vmem:[%s0 + $0x98] sm:$0xff]
  %v50 = vld [vmem:[%s0 + $0xa0] sm:$0xff]
  %v51 = vld [vmem:[%s0 + $0xa8] sm:$0xff]
  %v52 = vld [vmem:[%s0 + $0xb0] sm:$0xff]
  %v53 = vld [vmem:[%s0 + $0xb8] sm:$0xff]
  %vm54 = vcmask 130048
  %v56 = vsel %vm54, %v14, 0
  %v59 = vsel %vm54, %v15, 0
  %v62 = vsel %vm54, %v16, 0
  %v65 = vsel %vm54, %v17, 0
  %v68 = vsel %vm54, %v18, 0
  %v71 = vsel %vm54, %v19, 0
  %v74 = vsel %vm54, %v20, 0
  %v77 = vsel %vm54, %v21, 0
  %v80 = vsel %vm54, %v22, 0
  %v83 = vsel %vm54, %v23, 0
  %v86 = vsel %vm54, %v24, 0
  %v89 = vsel %vm54, %v25, 0
  %v92 = vsel %vm54, %v26, 0
  %v95 = vsel %vm54, %v27, 0
  %v98 = vsel %vm54, %v28, 0
  %v101 = vsel %vm54, %v29, 0
  %103 = vmatprep.subr.mxu0 0.0
  %104 = vmatpush1.msra.mxu0 0.0
  %105 = vmatprep.subr.mxu0 0.0
  %106 = vmatpush1.msra.mxu0 0.0
  %107 = vmatprep.subr.mxu0 0.0
  %108 = vmatpush1.msra.mxu0 0.0
  %109 = vmatprep.subr.mxu0 0.0
  %110 = vmatpush1.msra.mxu0 0.0
  %111 = vmatprep.subr.mxu0 0.0
  %112 = vmatpush1.msra.mxu0 0.0
  %113 = vmatprep.subr.mxu0 0.0
  %114 = vmatpush1.msra.mxu0 0.0
  %115 = vmatprep.subr.mxu0 0.0
  %116 = vmatpush1.msra.mxu0 0.0
  %117 = vmatprep.subr.mxu0 0.0
  %118 = vmatpush1.msra.mxu0 0.0
  %119 = vmatprep.subr.mxu0 0.0
  %120 = vmatpush1.msra.mxu0 0.0
  %121 = vmatprep.subr.mxu0 0.0
  %122 = vmatpush1.msra.mxu0 0.0
  %123 = vmatprep.subr.mxu0 0.0
  %124 = vmatpush1.msra.mxu0 0.0
  %125 = vmatprep.subr.mxu0 0.0
  %126 = vmatpush1.msra.mxu0 0.0
  %127 = vmatprep.subr.mxu0 0.0
  %128 = vmatpush1.msra.mxu0 0.0
  %129 = vmatprep.subr.mxu0 0.0
  %130 = vmatpush1.msra.mxu0 0.0
  %131 = vmatprep.subr.mxu0 %v43
  %132 = vmatpush1.msra.mxu0 %v42
  %133 = vmatprep.subr.mxu0 %v31
  %134 = vmatpush1.msra.mxu0 %v30
  %135 = vmatprep.subr.mxu0 0.0
  %136 = vmatpush2.msra.mxu0 0.0
  %137 = vmatprep.subr.mxu0 0.0
  %138 = vmatpush2.msra.mxu0 0.0
  %139 = vmatprep.subr.mxu0 0.0
  %140 = vmatpush2.msra.mxu0 0.0
  %141 = vmatprep.subr.mxu0 0.0
  %142 = vmatpush2.msra.mxu0 0.0
  %143 = vmatprep.subr.mxu0 0.0
  %144 = vmatpush2.msra.mxu0 0.0
  %145 = vmatprep.subr.mxu0 0.0
  %146 = vmatpush2.msra.mxu0 0.0
  %147 = vmatprep.subr.mxu0 0.0
  %148 = vmatpush2.msra.mxu0 0.0
  %149 = vmatprep.subr.mxu0 0.0
  %150 = vmatpush2.msra.mxu0 0.0
  %151 = vmatprep.subr.mxu0 0.0
  %152 = vmatpush2.msra.mxu0 0.0
  %153 = vmatprep.subr.mxu0 0.0
  %154 = vmatpush2.msra.mxu0 0.0
  %155 = vmatprep.subr.mxu0 0.0
  %156 = vmatpush2.msra.mxu0 0.0
  %157 = vmatprep.subr.mxu0 0.0
  %158 = vmatpush2.msra.mxu0 0.0
  %159 = vmatprep.subr.mxu0 0.0
  %160 = vmatpush2.msra.mxu0 0.0
  %161 = vmatprep.subr.mxu0 0.0
  %162 = vmatpush2.msra.mxu0 0.0
  %163 = vmatprep.subr.mxu0 0.0
  %164 = vmatpush2.msra.mxu0 0.0
  %165 = vmatprep.subr.mxu0 0.0
  %166 = vmatpush2.msra.mxu0 0.0
  %167 = vmatprep.mubr.f32.mxu0 0.0
  %168 = vmatmul.mubr.f32.gmra.mxu0 %v56
  %v169 = vpop.f32.mrf.mxu0
  %v170 = vadd.f32 0.0, %v169
  %v171 = vpop.f32.mrf.mxu0
  %v172 = vadd.f32 0.0, %v171
  %173 = vmatprep.mubr.f32.mxu0 0.0
  %174 = vmatmul.mubr.f32.gmra.mxu0 %v59
  %v175 = vpop.f32.mrf.mxu0
  %v176 = vadd.f32 0.0, %v175
  %v177 = vpop.f32.mrf.mxu0
  %v178 = vadd.f32 0.0, %v177
  %179 = vmatprep.mubr.f32.mxu0 0.0
  %180 = vmatmul.mubr.f32.gmra.mxu0 %v62
  %v181 = vpop.f32.mrf.mxu0
  %v182 = vadd.f32 0.0, %v181
  %v183 = vpop.f32.mrf.mxu0
  %v184 = vadd.f32 0.0, %v183
  %185 = vmatprep.mubr.f32.mxu0 0.0
  %186 = vmatmul.mubr.f32.gmra.mxu0 %v65
  %v187 = vpop.f32.mrf.mxu0
  %v188 = vadd.f32 0.0, %v187
  %v189 = vpop.f32.mrf.mxu0
  %v190 = vadd.f32 0.0, %v189
  %191 = vmatprep.mubr.f32.mxu0 0.0
  %192 = vmatmul.mubr.f32.gmra.mxu0 %v68
  %v193 = vpop.f32.mrf.mxu0
  %v194 = vadd.f32 0.0, %v193
  %v195 = vpop.f32.mrf.mxu0
  %v196 = vadd.f32 0.0, %v195
  %197 = vmatprep.mubr.f32.mxu0 0.0
  %198 = vmatmul.mubr.f32.gmra.mxu0 %v71
  %v199 = vpop.f32.mrf.mxu0
  %v200 = vadd.f32 0.0, %v199
  %v201 = vpop.f32.mrf.mxu0
  %v202 = vadd.f32 0.0, %v201
  %203 = vmatprep.mubr.f32.mxu0 0.0
  %204 = vmatmul.mubr.f32.gmra.mxu0 %v74
  %v205 = vpop.f32.mrf.mxu0
  %v206 = vadd.f32 0.0, %v205
  %v207 = vpop.f32.mrf.mxu0
  %v208 = vadd.f32 0.0, %v207
  %209 = vmatprep.mubr.f32.mxu0 0.0
  %210 = vmatmul.mubr.f32.gmra.mxu0 %v77
  %v211 = vpop.f32.mrf.mxu0
  %v212 = vadd.f32 0.0, %v211
  %v213 = vpop.f32.mrf.mxu0
  %v214 = vadd.f32 0.0, %v213
  %215 = vmatprep.mubr.f32.mxu0 0.0
  %216 = vmatmul.mubr.f32.gmra.mxu0 %v80
  %v217 = vpop.f32.mrf.mxu0
  %v218 = vadd.f32 0.0, %v217
  %v219 = vpop.f32.mrf.mxu0
  %v220 = vadd.f32 0.0, %v219
  %221 = vmatprep.mubr.f32.mxu0 0.0
  %222 = vmatmul.mubr.f32.gmra.mxu0 %v83
  %v223 = vpop.f32.mrf.mxu0
  %v224 = vadd.f32 0.0, %v223
  %v225 = vpop.f32.mrf.mxu0
  %v226 = vadd.f32 0.0, %v225
  %227 = vmatprep.mubr.f32.mxu0 0.0
  %228 = vmatmul.mubr.f32.gmra.mxu0 %v86
  %v229 = vpop.f32.mrf.mxu0
  %v230 = vadd.f32 0.0, %v229
  %v231 = vpop.f32.mrf.mxu0
  %v232 = vadd.f32 0.0, %v231
  %233 = vmatprep.mubr.f32.mxu0 0.0
  %234 = vmatmul.mubr.f32.gmra.mxu0 %v89
  %v235 = vpop.f32.mrf.mxu0
  %v236 = vadd.f32 0.0, %v235
  %v237 = vpop.f32.mrf.mxu0
  %v238 = vadd.f32 0.0, %v237
  %239 = vmatprep.mubr.f32.mxu0 0.0
  %240 = vmatmul.mubr.f32.gmra.mxu0 %v92
  %v241 = vpop.f32.mrf.mxu0
  %v242 = vadd.f32 0.0, %v241
  %v243 = vpop.f32.mrf.mxu0
  %v244 = vadd.f32 0.0, %v243
  %245 = vmatprep.mubr.f32.mxu0 0.0
  %246 = vmatmul.mubr.f32.gmra.mxu0 %v95
  %v247 = vpop.f32.mrf.mxu0
  %v248 = vadd.f32 0.0, %v247
  %v249 = vpop.f32.mrf.mxu0
  %v250 = vadd.f32 0.0, %v249
  %251 = vmatprep.mubr.f32.mxu0 0.0
  %252 = vmatmul.mubr.f32.gmra.mxu0 %v98
  %v253 = vpop.f32.mrf.mxu0
  %v254 = vadd.f32 0.0, %v253
  %v255 = vpop.f32.mrf.mxu0
  %v256 = vadd.f32 0.0, %v255
  %257 = vmatprep.mubr.f32.mxu0 0.0
  %258 = vmatmul.mubr.f32.gmra.mxu0 %v101
  %v259 = vpop.f32.mrf.mxu0
  %v260 = vadd.f32 0.0, %v259
  %v261 = vpop.f32.mrf.mxu0
  %v262 = vadd.f32 0.0, %v261
  %263 = vdwg.mxu0
  %264 = vmatprep.subr.mxu0 0.0
  %265 = vmatpush1.msra.mxu0 0.0
  %266 = vmatprep.subr.mxu0 0.0
  %267 = vmatpush1.msra.mxu0 0.0
  %268 = vmatprep.subr.mxu0 0.0
  %269 = vmatpush1.msra.mxu0 0.0
  %270 = vmatprep.subr.mxu0 0.0
  %271 = vmatpush1.msra.mxu0 0.0
  %272 = vmatprep.subr.mxu0 0.0
  %273 = vmatpush1.msra.mxu0 0.0
  %274 = vmatprep.subr.mxu0 0.0
  %275 = vmatpush1.msra.mxu0 0.0
  %276 = vmatprep.subr.mxu0 0.0
  %277 = vmatpush1.msra.mxu0 0.0
  %278 = vmatprep.subr.mxu0 0.0
  %279 = vmatpush1.msra.mxu0 0.0
  %280 = vmatprep.subr.mxu0 0.0
  %281 = vmatpush1.msra.mxu0 0.0
  %282 = vmatprep.subr.mxu0 0.0
  %283 = vmatpush1.msra.mxu0 0.0
  %284 = vmatprep.subr.mxu0 0.0
  %285 = vmatpush1.msra.mxu0 0.0
  %286 = vmatprep.subr.mxu0 0.0
  %287 = vmatpush1.msra.mxu0 0.0
  %288 = vmatprep.subr.mxu0 0.0
  %289 = vmatpush1.msra.mxu0 0.0
  %290 = vmatprep.subr.mxu0 0.0
  %291 = vmatpush1.msra.mxu0 0.0
  %292 = vmatprep.subr.mxu0 %v45
  %293 = vmatpush1.msra.mxu0 %v44
  %294 = vmatprep.subr.mxu0 %v33
  %295 = vmatpush1.msra.mxu0 %v32
  %296 = vmatprep.subr.mxu0 0.0
  %297 = vmatpush2.msra.mxu0 0.0
  %298 = vmatprep.subr.mxu0 0.0
  %299 = vmatpush2.msra.mxu0 0.0
  %300 = vmatprep.subr.mxu0 0.0
  %301 = vmatpush2.msra.mxu0 0.0
  %302 = vmatprep.subr.mxu0 0.0
  %303 = vmatpush2.msra.mxu0 0.0
  %304 = vmatprep.subr.mxu0 0.0
  %305 = vmatpush2.msra.mxu0 0.0
  %306 = vmatprep.subr.mxu0 0.0
  %307 = vmatpush2.msra.mxu0 0.0
  %308 = vmatprep.subr.mxu0 0.0
  %309 = vmatpush2.msra.mxu0 0.0
  %310 = vmatprep.subr.mxu0 0.0
  %311 = vmatpush2.msra.mxu0 0.0
  %312 = vmatprep.subr.mxu0 0.0
  %313 = vmatpush2.msra.mxu0 0.0
  %314 = vmatprep.subr.mxu0 0.0
  %315 = vmatpush2.msra.mxu0 0.0
  %316 = vmatprep.subr.mxu0 0.0
  %317 = vmatpush2.msra.mxu0 0.0
  %318 = vmatprep.subr.mxu0 0.0
  %319 = vmatpush2.msra.mxu0 0.0
  %320 = vmatprep.subr.mxu0 0.0
  %321 = vmatpush2.msra.mxu0 0.0
  %322 = vmatprep.subr.mxu0 0.0
  %323 = vmatpush2.msra.mxu0 0.0
  %324 = vmatprep.subr.mxu0 0.0
  %325 = vmatpush2.msra.mxu0 0.0
  %326 = vmatprep.subr.mxu0 0.0
  %327 = vmatpush2.msra.mxu0 0.0
  %328 = vmatprep.mubr.f32.mxu0 0.0
  %329 = vmatmul.mubr.f32.gmra.mxu0 %v56
  %v330 = vpop.f32.mrf.mxu0
  %v331 = vadd.f32 0.0, %v330
  %v332 = vpop.f32.mrf.mxu0
  %v333 = vadd.f32 0.0, %v332
  %334 = vmatprep.mubr.f32.mxu0 0.0
  %335 = vmatmul.mubr.f32.gmra.mxu0 %v59
  %v336 = vpop.f32.mrf.mxu0
  %v337 = vadd.f32 0.0, %v336
  %v338 = vpop.f32.mrf.mxu0
  %v339 = vadd.f32 0.0, %v338
  %340 = vmatprep.mubr.f32.mxu0 0.0
  %341 = vmatmul.mubr.f32.gmra.mxu0 %v62
  %v342 = vpop.f32.mrf.mxu0
  %v343 = vadd.f32 0.0, %v342
  %v344 = vpop.f32.mrf.mxu0
  %v345 = vadd.f32 0.0, %v344
  %346 = vmatprep.mubr.f32.mxu0 0.0
  %347 = vmatmul.mubr.f32.gmra.mxu0 %v65
  %v348 = vpop.f32.mrf.mxu0
  %v349 = vadd.f32 0.0, %v348
  %v350 = vpop.f32.mrf.mxu0
  %v351 = vadd.f32 0.0, %v350
  %352 = vmatprep.mubr.f32.mxu0 0.0
  %353 = vmatmul.mubr.f32.gmra.mxu0 %v68
  %v354 = vpop.f32.mrf.mxu0
  %v355 = vadd.f32 0.0, %v354
  %v356 = vpop.f32.mrf.mxu0
  %v357 = vadd.f32 0.0, %v356
  %358 = vmatprep.mubr.f32.mxu0 0.0
  %359 = vmatmul.mubr.f32.gmra.mxu0 %v71
  %v360 = vpop.f32.mrf.mxu0
  %v361 = vadd.f32 0.0, %v360
  %v362 = vpop.f32.mrf.mxu0
  %v363 = vadd.f32 0.0, %v362
  %364 = vmatprep.mubr.f32.mxu0 0.0
  %365 = vmatmul.mubr.f32.gmra.mxu0 %v74
  %v366 = vpop.f32.mrf.mxu0
  %v367 = vadd.f32 0.0, %v366
  %v368 = vpop.f32.mrf.mxu0
  %v369 = vadd.f32 0.0, %v368
  %370 = vmatprep.mubr.f32.mxu0 0.0
  %371 = vmatmul.mubr.f32.gmra.mxu0 %v77
  %v372 = vpop.f32.mrf.mxu0
  %v373 = vadd.f32 0.0, %v372
  %v374 = vpop.f32.mrf.mxu0
  %v375 = vadd.f32 0.0, %v374
  %376 = vmatprep.mubr.f32.mxu0 0.0
  %377 = vmatmul.mubr.f32.gmra.mxu0 %v80
  %v378 = vpop.f32.mrf.mxu0
  %v379 = vadd.f32 0.0, %v378
  %v380 = vpop.f32.mrf.mxu0
  %v381 = vadd.f32 0.0, %v380
  %382 = vmatprep.mubr.f32.mxu0 0.0
  %383 = vmatmul.mubr.f32.gmra.mxu0 %v83
  %v384 = vpop.f32.mrf.mxu0
  %v385 = vadd.f32 0.0, %v384
  %v386 = vpop.f32.mrf.mxu0
  %v387 = vadd.f32 0.0, %v386
  %388 = vmatprep.mubr.f32.mxu0 0.0
  %389 = vmatmul.mubr.f32.gmra.mxu0 %v86
  %v390 = vpop.f32.mrf.mxu0
  %v391 = vadd.f32 0.0, %v390
  %v392 = vpop.f32.mrf.mxu0
  %v393 = vadd.f32 0.0, %v392
  %394 = vmatprep.mubr.f32.mxu0 0.0
  %395 = vmatmul.mubr.f32.gmra.mxu0 %v89
  %v396 = vpop.f32.mrf.mxu0
  %v397 = vadd.f32 0.0, %v396
  %v398 = vpop.f32.mrf.mxu0
  %v399 = vadd.f32 0.0, %v398
  %400 = vmatprep.mubr.f32.mxu0 0.0
  %401 = vmatmul.mubr.f32.gmra.mxu0 %v92
  %v402 = vpop.f32.mrf.mxu0
  %v403 = vadd.f32 0.0, %v402
  %v404 = vpop.f32.mrf.mxu0
  %v405 = vadd.f32 0.0, %v404
  %406 = vmatprep.mubr.f32.mxu0 0.0
  %407 = vmatmul.mubr.f32.gmra.mxu0 %v95
  %v408 = vpop.f32.mrf.mxu0
  %v409 = vadd.f32 0.0, %v408
  %v410 = vpop.f32.mrf.mxu0
  %v411 = vadd.f32 0.0, %v410
  %412 = vmatprep.mubr.f32.mxu0 0.0
  %413 = vmatmul.mubr.f32.gmra.mxu0 %v98
  %v414 = vpop.f32.mrf.mxu0
  %v415 = vadd.f32 0.0, %v414
  %v416 = vpop.f32.mrf.mxu0
  %v417 = vadd.f32 0.0, %v416
  %418 = vmatprep.mubr.f32.mxu0 0.0
  %419 = vmatmul.mubr.f32.gmra.mxu0 %v101
  %v420 = vpop.f32.mrf.mxu0
  %v421 = vadd.f32 0.0, %v420
  %v422 = vpop.f32.mrf.mxu0
  %v423 = vadd.f32 0.0, %v422
  %424 = vdwg.mxu0
  %425 = vmatprep.subr.mxu0 0.0
  %426 = vmatpush1.msra.mxu0 0.0
  %427 = vmatprep.subr.mxu0 0.0
  %428 = vmatpush1.msra.mxu0 0.0
  %429 = vmatprep.subr.mxu0 0.0
  %430 = vmatpush1.msra.mxu0 0.0
  %431 = vmatprep.subr.mxu0 0.0
  %432 = vmatpush1.msra.mxu0 0.0
  %433 = vmatprep.subr.mxu0 0.0
  %434 = vmatpush1.msra.mxu0 0.0
  %435 = vmatprep.subr.mxu0 0.0
  %436 = vmatpush1.msra.mxu0 0.0
  %437 = vmatprep.subr.mxu0 0.0
  %438 = vmatpush1.msra.mxu0 0.0
  %439 = vmatprep.subr.mxu0 0.0
  %440 = vmatpush1.msra.mxu0 0.0
  %441 = vmatprep.subr.mxu0 0.0
  %442 = vmatpush1.msra.mxu0 0.0
  %443 = vmatprep.subr.mxu0 0.0
  %444 = vmatpush1.msra.mxu0 0.0
  %445 = vmatprep.subr.mxu0 0.0
  %446 = vmatpush1.msra.mxu0 0.0
  %447 = vmatprep.subr.mxu0 0.0
  %448 = vmatpush1.msra.mxu0 0.0
  %449 = vmatprep.subr.mxu0 0.0
  %450 = vmatpush1.msra.mxu0 0.0
  %451 = vmatprep.subr.mxu0 0.0
  %452 = vmatpush1.msra.mxu0 0.0
  %453 = vmatprep.subr.mxu0 %v47
  %454 = vmatpush1.msra.mxu0 %v46
  %455 = vmatprep.subr.mxu0 %v35
  %456 = vmatpush1.msra.mxu0 %v34
  %457 = vmatprep.subr.mxu0 0.0
  %458 = vmatpush2.msra.mxu0 0.0
  %459 = vmatprep.subr.mxu0 0.0
  %460 = vmatpush2.msra.mxu0 0.0
  %461 = vmatprep.subr.mxu0 0.0
  %462 = vmatpush2.msra.mxu0 0.0
  %463 = vmatprep.subr.mxu0 0.0
  %464 = vmatpush2.msra.mxu0 0.0
  %465 = vmatprep.subr.mxu0 0.0
  %466 = vmatpush2.msra.mxu0 0.0
  %467 = vmatprep.subr.mxu0 0.0
  %468 = vmatpush2.msra.mxu0 0.0
  %469 = vmatprep.subr.mxu0 0.0
  %470 = vmatpush2.msra.mxu0 0.0
  %471 = vmatprep.subr.mxu0 0.0
  %472 = vmatpush2.msra.mxu0 0.0
  %473 = vmatprep.subr.mxu0 0.0
  %474 = vmatpush2.msra.mxu0 0.0
  %475 = vmatprep.subr.mxu0 0.0
  %476 = vmatpush2.msra.mxu0 0.0
  %477 = vmatprep.subr.mxu0 0.0
  %478 = vmatpush2.msra.mxu0 0.0
  %479 = vmatprep.subr.mxu0 0.0
  %480 = vmatpush2.msra.mxu0 0.0
  %481 = vmatprep.subr.mxu0 0.0
  %482 = vmatpush2.msra.mxu0 0.0
  %483 = vmatprep.subr.mxu0 0.0
  %484 = vmatpush2.msra.mxu0 0.0
  %485 = vmatprep.subr.mxu0 0.0
  %486 = vmatpush2.msra.mxu0 0.0
  %487 = vmatprep.subr.mxu0 0.0
  %488 = vmatpush2.msra.mxu0 0.0
  %489 = vmatprep.mubr.f32.mxu0 0.0
  %490 = vmatmul.mubr.f32.gmra.mxu0 %v56
  %v491 = vpop.f32.mrf.mxu0
  %v492 = vadd.f32 0.0, %v491
  %v493 = vpop.f32.mrf.mxu0
  %v494 = vadd.f32 0.0, %v493
  %495 = vmatprep.mubr.f32.mxu0 0.0
  %496 = vmatmul.mubr.f32.gmra.mxu0 %v59
  %v497 = vpop.f32.mrf.mxu0
  %v498 = vadd.f32 0.0, %v497
  %v499 = vpop.f32.mrf.mxu0
  %v500 = vadd.f32 0.0, %v499
  %501 = vmatprep.mubr.f32.mxu0 0.0
  %502 = vmatmul.mubr.f32.gmra.mxu0 %v62
  %v503 = vpop.f32.mrf.mxu0
  %v504 = vadd.f32 0.0, %v503
  %v505 = vpop.f32.mrf.mxu0
  %v506 = vadd.f32 0.0, %v505
  %507 = vmatprep.mubr.f32.mxu0 0.0
  %508 = vmatmul.mubr.f32.gmra.mxu0 %v65
  %v509 = vpop.f32.mrf.mxu0
  %v510 = vadd.f32 0.0, %v509
  %v511 = vpop.f32.mrf.mxu0
  %v512 = vadd.f32 0.0, %v511
  %513 = vmatprep.mubr.f32.mxu0 0.0
  %514 = vmatmul.mubr.f32.gmra.mxu0 %v68
  %v515 = vpop.f32.mrf.mxu0
  %v516 = vadd.f32 0.0, %v515
  %v517 = vpop.f32.mrf.mxu0
  %v518 = vadd.f32 0.0, %v517
  %519 = vmatprep.mubr.f32.mxu0 0.0
  %520 = vmatmul.mubr.f32.gmra.mxu0 %v71
  %v521 = vpop.f32.mrf.mxu0
  %v522 = vadd.f32 0.0, %v521
  %v523 = vpop.f32.mrf.mxu0
  %v524 = vadd.f32 0.0, %v523
  %525 = vmatprep.mubr.f32.mxu0 0.0
  %526 = vmatmul.mubr.f32.gmra.mxu0 %v74
  %v527 = vpop.f32.mrf.mxu0
  %v528 = vadd.f32 0.0, %v527
  %v529 = vpop.f32.mrf.mxu0
  %v530 = vadd.f32 0.0, %v529
  %531 = vmatprep.mubr.f32.mxu0 0.0
  %532 = vmatmul.mubr.f32.gmra.mxu0 %v77
  %v533 = vpop.f32.mrf.mxu0
  %v534 = vadd.f32 0.0, %v533
  %v535 = vpop.f32.mrf.mxu0
  %v536 = vadd.f32 0.0, %v535
  %537 = vmatprep.mubr.f32.mxu0 0.0
  %538 = vmatmul.mubr.f32.gmra.mxu0 %v80
  %v539 = vpop.f32.mrf.mxu0
  %v540 = vadd.f32 0.0, %v539
  %v541 = vpop.f32.mrf.mxu0
  %v542 = vadd.f32 0.0, %v541
  %543 = vmatprep.mubr.f32.mxu0 0.0
  %544 = vmatmul.mubr.f32.gmra.mxu0 %v83
  %v545 = vpop.f32.mrf.mxu0
  %v546 = vadd.f32 0.0, %v545
  %v547 = vpop.f32.mrf.mxu0
  %v548 = vadd.f32 0.0, %v547
  %549 = vmatprep.mubr.f32.mxu0 0.0
  %550 = vmatmul.mubr.f32.gmra.mxu0 %v86
  %v551 = vpop.f32.mrf.mxu0
  %v552 = vadd.f32 0.0, %v551
  %v553 = vpop.f32.mrf.mxu0
  %v554 = vadd.f32 0.0, %v553
  %555 = vmatprep.mubr.f32.mxu0 0.0
  %556 = vmatmul.mubr.f32.gmra.mxu0 %v89
  %v557 = vpop.f32.mrf.mxu0
  %v558 = vadd.f32 0.0, %v557
  %v559 = vpop.f32.mrf.mxu0
  %v560 = vadd.f32 0.0, %v559
  %561 = vmatprep.mubr.f32.mxu0 0.0
  %562 = vmatmul.mubr.f32.gmra.mxu0 %v92
  %v563 = vpop.f32.mrf.mxu0
  %v564 = vadd.f32 0.0, %v563
  %v565 = vpop.f32.mrf.mxu0
  %v566 = vadd.f32 0.0, %v565
  %567 = vmatprep.mubr.f32.mxu0 0.0
  %568 = vmatmul.mubr.f32.gmra.mxu0 %v95
  %v569 = vpop.f32.mrf.mxu0
  %v570 = vadd.f32 0.0, %v569
  %v571 = vpop.f32.mrf.mxu0
  %v572 = vadd.f32 0.0, %v571
  %573 = vmatprep.mubr.f32.mxu0 0.0
  %574 = vmatmul.mubr.f32.gmra.mxu0 %v98
  %v575 = vpop.f32.mrf.mxu0
  %v576 = vadd.f32 0.0, %v575
  %v577 = vpop.f32.mrf.mxu0
  %v578 = vadd.f32 0.0, %v577
  %579 = vmatprep.mubr.f32.mxu0 0.0
  %580 = vmatmul.mubr.f32.gmra.mxu0 %v101
  %v581 = vpop.f32.mrf.mxu0
  %v582 = vadd.f32 0.0, %v581
  %v583 = vpop.f32.mrf.mxu0
  %v584 = vadd.f32 0.0, %v583
  %585 = vdwg.mxu0
  %586 = vmatprep.subr.mxu0 0.0
  %587 = vmatpush1.msra.mxu0 0.0
  %588 = vmatprep.subr.mxu0 0.0
  %589 = vmatpush1.msra.mxu0 0.0
  %590 = vmatprep.subr.mxu0 0.0
  %591 = vmatpush1.msra.mxu0 0.0
  %592 = vmatprep.subr.mxu0 0.0
  %593 = vmatpush1.msra.mxu0 0.0
  %594 = vmatprep.subr.mxu0 0.0
  %595 = vmatpush1.msra.mxu0 0.0
  %596 = vmatprep.subr.mxu0 0.0
  %597 = vmatpush1.msra.mxu0 0.0
  %598 = vmatprep.subr.mxu0 0.0
  %599 = vmatpush1.msra.mxu0 0.0
  %600 = vmatprep.subr.mxu0 0.0
  %601 = vmatpush1.msra.mxu0 0.0
  %602 = vmatprep.subr.mxu0 0.0
  %603 = vmatpush1.msra.mxu0 0.0
  %604 = vmatprep.subr.mxu0 0.0
  %605 = vmatpush1.msra.mxu0 0.0
  %606 = vmatprep.subr.mxu0 0.0
  %607 = vmatpush1.msra.mxu0 0.0
  %608 = vmatprep.subr.mxu0 0.0
  %609 = vmatpush1.msra.mxu0 0.0
  %610 = vmatprep.subr.mxu0 0.0
  %611 = vmatpush1.msra.mxu0 0.0
  %612 = vmatprep.subr.mxu0 0.0
  %613 = vmatpush1.msra.mxu0 0.0
  %614 = vmatprep.subr.mxu0 %v49
  %615 = vmatpush1.msra.mxu0 %v48
  %616 = vmatprep.subr.mxu0 %v37
  %617 = vmatpush1.msra.mxu0 %v36
  %618 = vmatprep.subr.mxu0 0.0
  %619 = vmatpush2.msra.mxu0 0.0
  %620 = vmatprep.subr.mxu0 0.0
  %621 = vmatpush2.msra.mxu0 0.0
  %622 = vmatprep.subr.mxu0 0.0
  %623 = vmatpush2.msra.mxu0 0.0
  %624 = vmatprep.subr.mxu0 0.0
  %625 = vmatpush2.msra.mxu0 0.0
  %626 = vmatprep.subr.mxu0 0.0
  %627 = vmatpush2.msra.mxu0 0.0
  %628 = vmatprep.subr.mxu0 0.0
  %629 = vmatpush2.msra.mxu0 0.0
  %630 = vmatprep.subr.mxu0 0.0
  %631 = vmatpush2.msra.mxu0 0.0
  %632 = vmatprep.subr.mxu0 0.0
  %633 = vmatpush2.msra.mxu0 0.0
  %634 = vmatprep.subr.mxu0 0.0
  %635 = vmatpush2.msra.mxu0 0.0
  %636 = vmatprep.subr.mxu0 0.0
  %637 = vmatpush2.msra.mxu0 0.0
  %638 = vmatprep.subr.mxu0 0.0
  %639 = vmatpush2.msra.mxu0 0.0
  %640 = vmatprep.subr.mxu0 0.0
  %641 = vmatpush2.msra.mxu0 0.0
  %642 = vmatprep.subr.mxu0 0.0
  %643 = vmatpush2.msra.mxu0 0.0
  %644 = vmatprep.subr.mxu0 0.0
  %645 = vmatpush2.msra.mxu0 0.0
  %646 = vmatprep.subr.mxu0 0.0
  %647 = vmatpush2.msra.mxu0 0.0
  %648 = vmatprep.subr.mxu0 0.0
  %649 = vmatpush2.msra.mxu0 0.0
  %650 = vmatprep.mubr.f32.mxu0 0.0
  %651 = vmatmul.mubr.f32.gmra.mxu0 %v56
  %v652 = vpop.f32.mrf.mxu0
  %v653 = vadd.f32 0.0, %v652
  %v654 = vpop.f32.mrf.mxu0
  %v655 = vadd.f32 0.0, %v654
  %656 = vmatprep.mubr.f32.mxu0 0.0
  %657 = vmatmul.mubr.f32.gmra.mxu0 %v59
  %v658 = vpop.f32.mrf.mxu0
  %v659 = vadd.f32 0.0, %v658
  %v660 = vpop.f32.mrf.mxu0
  %v661 = vadd.f32 0.0, %v660
  %662 = vmatprep.mubr.f32.mxu0 0.0
  %663 = vmatmul.mubr.f32.gmra.mxu0 %v62
  %v664 = vpop.f32.mrf.mxu0
  %v665 = vadd.f32 0.0, %v664
  %v666 = vpop.f32.mrf.mxu0
  %v667 = vadd.f32 0.0, %v666
  %668 = vmatprep.mubr.f32.mxu0 0.0
  %669 = vmatmul.mubr.f32.gmra.mxu0 %v65
  %v670 = vpop.f32.mrf.mxu0
  %v671 = vadd.f32 0.0, %v670
  %v672 = vpop.f32.mrf.mxu0
  %v673 = vadd.f32 0.0, %v672
  %674 = vmatprep.mubr.f32.mxu0 0.0
  %675 = vmatmul.mubr.f32.gmra.mxu0 %v68
  %v676 = vpop.f32.mrf.mxu0
  %v677 = vadd.f32 0.0, %v676
  %v678 = vpop.f32.mrf.mxu0
  %v679 = vadd.f32 0.0, %v678
  %680 = vmatprep.mubr.f32.mxu0 0.0
  %681 = vmatmul.mubr.f32.gmra.mxu0 %v71
  %v682 = vpop.f32.mrf.mxu0
  %v683 = vadd.f32 0.0, %v682
  %v684 = vpop.f32.mrf.mxu0
  %v685 = vadd.f32 0.0, %v684
  %686 = vmatprep.mubr.f32.mxu0 0.0
  %687 = vmatmul.mubr.f32.gmra.mxu0 %v74
  %v688 = vpop.f32.mrf.mxu0
  %v689 = vadd.f32 0.0, %v688
  %v690 = vpop.f32.mrf.mxu0
  %v691 = vadd.f32 0.0, %v690
  %692 = vmatprep.mubr.f32.mxu0 0.0
  %693 = vmatmul.mubr.f32.gmra.mxu0 %v77
  %v694 = vpop.f32.mrf.mxu0
  %v695 = vadd.f32 0.0, %v694
  %v696 = vpop.f32.mrf.mxu0
  %v697 = vadd.f32 0.0, %v696
  %698 = vmatprep.mubr.f32.mxu0 0.0
  %699 = vmatmul.mubr.f32.gmra.mxu0 %v80
  %v700 = vpop.f32.mrf.mxu0
  %v701 = vadd.f32 0.0, %v700
  %v702 = vpop.f32.mrf.mxu0
  %v703 = vadd.f32 0.0, %v702
  %704 = vmatprep.mubr.f32.mxu0 0.0
  %705 = vmatmul.mubr.f32.gmra.mxu0 %v83
  %v706 = vpop.f32.mrf.mxu0
  %v707 = vadd.f32 0.0, %v706
  %v708 = vpop.f32.mrf.mxu0
  %v709 = vadd.f32 0.0, %v708
  %710 = vmatprep.mubr.f32.mxu0 0.0
  %711 = vmatmul.mubr.f32.gmra.mxu0 %v86
  %v712 = vpop.f32.mrf.mxu0
  %v713 = vadd.f32 0.0, %v712
  %v714 = vpop.f32.mrf.mxu0
  %v715 = vadd.f32 0.0, %v714
  %716 = vmatprep.mubr.f32.mxu0 0.0
  %717 = vmatmul.mubr.f32.gmra.mxu0 %v89
  %v718 = vpop.f32.mrf.mxu0
  %v719 = vadd.f32 0.0, %v718
  %v720 = vpop.f32.mrf.mxu0
  %v721 = vadd.f32 0.0, %v720
  %722 = vmatprep.mubr.f32.mxu0 0.0
  %723 = vmatmul.mubr.f32.gmra.mxu0 %v92
  %v724 = vpop.f32.mrf.mxu0
  %v725 = vadd.f32 0.0, %v724
  %v726 = vpop.f32.mrf.mxu0
  %v727 = vadd.f32 0.0, %v726
  %728 = vmatprep.mubr.f32.mxu0 0.0
  %729 = vmatmul.mubr.f32.gmra.mxu0 %v95
  %v730 = vpop.f32.mrf.mxu0
  %v731 = vadd.f32 0.0, %v730
  %v732 = vpop.f32.mrf.mxu0
  %v733 = vadd.f32 0.0, %v732
  %734 = vmatprep.mubr.f32.mxu0 0.0
  %735 = vmatmul.mubr.f32.gmra.mxu0 %v98
  %v736 = vpop.f32.mrf.mxu0
  %v737 = vadd.f32 0.0, %v736
  %v738 = vpop.f32.mrf.mxu0
  %v739 = vadd.f32 0.0, %v738
  %740 = vmatprep.mubr.f32.mxu0 0.0
  %741 = vmatmul.mubr.f32.gmra.mxu0 %v101
  %v742 = vpop.f32.mrf.mxu0
  %v743 = vadd.f32 0.0, %v742
  %v744 = vpop.f32.mrf.mxu0
  %v745 = vadd.f32 0.0, %v744
  %746 = vdwg.mxu0
  %747 = vmatprep.subr.mxu0 0.0
  %748 = vmatpush1.msra.mxu0 0.0
  %749 = vmatprep.subr.mxu0 0.0
  %750 = vmatpush1.msra.mxu0 0.0
  %751 = vmatprep.subr.mxu0 0.0
  %752 = vmatpush1.msra.mxu0 0.0
  %753 = vmatprep.subr.mxu0 0.0
  %754 = vmatpush1.msra.mxu0 0.0
  %755 = vmatprep.subr.mxu0 0.0
  %756 = vmatpush1.msra.mxu0 0.0
  %757 = vmatprep.subr.mxu0 0.0
  %758 = vmatpush1.msra.mxu0 0.0
  %759 = vmatprep.subr.mxu0 0.0
  %760 = vmatpush1.msra.mxu0 0.0
  %761 = vmatprep.subr.mxu0 0.0
  %762 = vmatpush1.msra.mxu0 0.0
  %763 = vmatprep.subr.mxu0 0.0
  %764 = vmatpush1.msra.mxu0 0.0
  %765 = vmatprep.subr.mxu0 0.0
  %766 = vmatpush1.msra.mxu0 0.0
  %767 = vmatprep.subr.mxu0 0.0
  %768 = vmatpush1.msra.mxu0 0.0
  %769 = vmatprep.subr.mxu0 0.0
  %770 = vmatpush1.msra.mxu0 0.0
  %771 = vmatprep.subr.mxu0 0.0
  %772 = vmatpush1.msra.mxu0 0.0
  %773 = vmatprep.subr.mxu0 0.0
  %774 = vmatpush1.msra.mxu0 0.0
  %775 = vmatprep.subr.mxu0 %v51
  %776 = vmatpush1.msra.mxu0 %v50
  %777 = vmatprep.subr.mxu0 %v39
  %778 = vmatpush1.msra.mxu0 %v38
  %779 = vmatprep.subr.mxu0 0.0
  %780 = vmatpush2.msra.mxu0 0.0
  %781 = vmatprep.subr.mxu0 0.0
  %782 = vmatpush2.msra.mxu0 0.0
  %783 = vmatprep.subr.mxu0 0.0
  %784 = vmatpush2.msra.mxu0 0.0
  %785 = vmatprep.subr.mxu0 0.0
  %786 = vmatpush2.msra.mxu0 0.0
  %787 = vmatprep.subr.mxu0 0.0
  %788 = vmatpush2.msra.mxu0 0.0
  %789 = vmatprep.subr.mxu0 0.0
  %790 = vmatpush2.msra.mxu0 0.0
  %791 = vmatprep.subr.mxu0 0.0
  %792 = vmatpush2.msra.mxu0 0.0
  %793 = vmatprep.subr.mxu0 0.0
  %794 = vmatpush2.msra.mxu0 0.0
  %795 = vmatprep.subr.mxu0 0.0
  %796 = vmatpush2.msra.mxu0 0.0
  %797 = vmatprep.subr.mxu0 0.0
  %798 = vmatpush2.msra.mxu0 0.0
  %799 = vmatprep.subr.mxu0 0.0
  %800 = vmatpush2.msra.mxu0 0.0
  %801 = vmatprep.subr.mxu0 0.0
  %802 = vmatpush2.msra.mxu0 0.0
  %803 = vmatprep.subr.mxu0 0.0
  %804 = vmatpush2.msra.mxu0 0.0
  %805 = vmatprep.subr.mxu0 0.0
  %806 = vmatpush2.msra.mxu0 0.0
  %807 = vmatprep.subr.mxu0 0.0
  %808 = vmatpush2.msra.mxu0 0.0
  %809 = vmatprep.subr.mxu0 0.0
  %810 = vmatpush2.msra.mxu0 0.0
  %811 = vmatprep.mubr.f32.mxu0 0.0
  %812 = vmatmul.mubr.f32.gmra.mxu0 %v56
  %v813 = vpop.f32.mrf.mxu0
  %v814 = vadd.f32 0.0, %v813
  %v815 = vpop.f32.mrf.mxu0
  %v816 = vadd.f32 0.0, %v815
  %817 = vmatprep.mubr.f32.mxu0 0.0
  %818 = vmatmul.mubr.f32.gmra.mxu0 %v59
  %v819 = vpop.f32.mrf.mxu0
  %v820 = vadd.f32 0.0, %v819
  %v821 = vpop.f32.mrf.mxu0
  %v822 = vadd.f32 0.0, %v821
  %823 = vmatprep.mubr.f32.mxu0 0.0
  %824 = vmatmul.mubr.f32.gmra.mxu0 %v62
  %v825 = vpop.f32.mrf.mxu0
  %v826 = vadd.f32 0.0, %v825
  %v827 = vpop.f32.mrf.mxu0
  %v828 = vadd.f32 0.0, %v827
  %829 = vmatprep.mubr.f32.mxu0 0.0
  %830 = vmatmul.mubr.f32.gmra.mxu0 %v65
  %v831 = vpop.f32.mrf.mxu0
  %v832 = vadd.f32 0.0, %v831
  %v833 = vpop.f32.mrf.mxu0
  %v834 = vadd.f32 0.0, %v833
  %835 = vmatprep.mubr.f32.mxu0 0.0
  %836 = vmatmul.mubr.f32.gmra.mxu0 %v68
  %v837 = vpop.f32.mrf.mxu0
  %v838 = vadd.f32 0.0, %v837
  %v839 = vpop.f32.mrf.mxu0
  %v840 = vadd.f32 0.0, %v839
  %841 = vmatprep.mubr.f32.mxu0 0.0
  %842 = vmatmul.mubr.f32.gmra.mxu0 %v71
  %v843 = vpop.f32.mrf.mxu0
  %v844 = vadd.f32 0.0, %v843
  %v845 = vpop.f32.mrf.mxu0
  %v846 = vadd.f32 0.0, %v845
  %847 = vmatprep.mubr.f32.mxu0 0.0
  %848 = vmatmul.mubr.f32.gmra.mxu0 %v74
  %v849 = vpop.f32.mrf.mxu0
  %v850 = vadd.f32 0.0, %v849
  %v851 = vpop.f32.mrf.mxu0
  %v852 = vadd.f32 0.0, %v851
  %853 = vmatprep.mubr.f32.mxu0 0.0
  %854 = vmatmul.mubr.f32.gmra.mxu0 %v77
  %v855 = vpop.f32.mrf.mxu0
  %v856 = vadd.f32 0.0, %v855
  %v857 = vpop.f32.mrf.mxu0
  %v858 = vadd.f32 0.0, %v857
  %859 = vmatprep.mubr.f32.mxu0 0.0
  %860 = vmatmul.mubr.f32.gmra.mxu0 %v80
  %v861 = vpop.f32.mrf.mxu0
  %v862 = vadd.f32 0.0, %v861
  %v863 = vpop.f32.mrf.mxu0
  %v864 = vadd.f32 0.0, %v863
  %865 = vmatprep.mubr.f32.mxu0 0.0
  %866 = vmatmul.mubr.f32.gmra.mxu0 %v83
  %v867 = vpop.f32.mrf.mxu0
  %v868 = vadd.f32 0.0, %v867
  %v869 = vpop.f32.mrf.mxu0
  %v870 = vadd.f32 0.0, %v869
  %871 = vmatprep.mubr.f32.mxu0 0.0
  %872 = vmatmul.mubr.f32.gmra.mxu0 %v86
  %v873 = vpop.f32.mrf.mxu0
  %v874 = vadd.f32 0.0, %v873
  %v875 = vpop.f32.mrf.mxu0
  %v876 = vadd.f32 0.0, %v875
  %877 = vmatprep.mubr.f32.mxu0 0.0
  %878 = vmatmul.mubr.f32.gmra.mxu0 %v89
  %v879 = vpop.f32.mrf.mxu0
  %v880 = vadd.f32 0.0, %v879
  %v881 = vpop.f32.mrf.mxu0
  %v882 = vadd.f32 0.0, %v881
  %883 = vmatprep.mubr.f32.mxu0 0.0
  %884 = vmatmul.mubr.f32.gmra.mxu0 %v92
  %v885 = vpop.f32.mrf.mxu0
  %v886 = vadd.f32 0.0, %v885
  %v887 = vpop.f32.mrf.mxu0
  %v888 = vadd.f32 0.0, %v887
  %889 = vmatprep.mubr.f32.mxu0 0.0
  %890 = vmatmul.mubr.f32.gmra.mxu0 %v95
  %v891 = vpop.f32.mrf.mxu0
  %v892 = vadd.f32 0.0, %v891
  %v893 = vpop.f32.mrf.mxu0
  %v894 = vadd.f32 0.0, %v893
  %895 = vmatprep.mubr.f32.mxu0 0.0
  %896 = vmatmul.mubr.f32.gmra.mxu0 %v98
  %v897 = vpop.f32.mrf.mxu0
  %v898 = vadd.f32 0.0, %v897
  %v899 = vpop.f32.mrf.mxu0
  %v900 = vadd.f32 0.0, %v899
  %901 = vmatprep.mubr.f32.mxu0 0.0
  %902 = vmatmul.mubr.f32.gmra.mxu0 %v101
  %v903 = vpop.f32.mrf.mxu0
  %v904 = vadd.f32 0.0, %v903
  %v905 = vpop.f32.mrf.mxu0
  %v906 = vadd.f32 0.0, %v905
  %907 = vdwg.mxu0
  %908 = vmatprep.subr.mxu0 0.0
  %909 = vmatpush1.msra.mxu0 0.0
  %910 = vmatprep.subr.mxu0 0.0
  %911 = vmatpush1.msra.mxu0 0.0
  %912 = vmatprep.subr.mxu0 0.0
  %913 = vmatpush1.msra.mxu0 0.0
  %914 = vmatprep.subr.mxu0 0.0
  %915 = vmatpush1.msra.mxu0 0.0
  %916 = vmatprep.subr.mxu0 0.0
  %917 = vmatpush1.msra.mxu0 0.0
  %918 = vmatprep.subr.mxu0 0.0
  %919 = vmatpush1.msra.mxu0 0.0
  %920 = vmatprep.subr.mxu0 0.0
  %921 = vmatpush1.msra.mxu0 0.0
  %922 = vmatprep.subr.mxu0 0.0
  %923 = vmatpush1.msra.mxu0 0.0
  %924 = vmatprep.subr.mxu0 0.0
  %925 = vmatpush1.msra.mxu0 0.0
  %926 = vmatprep.subr.mxu0 0.0
  %927 = vmatpush1.msra.mxu0 0.0
  %928 = vmatprep.subr.mxu0 0.0
  %929 = vmatpush1.msra.mxu0 0.0
  %930 = vmatprep.subr.mxu0 0.0
  %931 = vmatpush1.msra.mxu0 0.0
  %932 = vmatprep.subr.mxu0 0.0
  %933 = vmatpush1.msra.mxu0 0.0
  %934 = vmatprep.subr.mxu0 0.0
  %935 = vmatpush1.msra.mxu0 0.0
  %936 = vmatprep.subr.mxu0 %v53
  %937 = vmatpush1.msra.mxu0 %v52
  %938 = vmatprep.subr.mxu0 %v41
  %939 = vmatpush1.msra.mxu0 %v40
  %940 = vmatprep.subr.mxu0 0.0
  %941 = vmatpush2.msra.mxu0 0.0
  %942 = vmatprep.subr.mxu0 0.0
  %943 = vmatpush2.msra.mxu0 0.0
  %944 = vmatprep.subr.mxu0 0.0
  %945 = vmatpush2.msra.mxu0 0.0
  %946 = vmatprep.subr.mxu0 0.0
  %947 = vmatpush2.msra.mxu0 0.0
  %948 = vmatprep.subr.mxu0 0.0
  %949 = vmatpush2.msra.mxu0 0.0
  %950 = vmatprep.subr.mxu0 0.0
  %951 = vmatpush2.msra.mxu0 0.0
  %952 = vmatprep.subr.mxu0 0.0
  %953 = vmatpush2.msra.mxu0 0.0
  %954 = vmatprep.subr.mxu0 0.0
  %955 = vmatpush2.msra.mxu0 0.0
  %956 = vmatprep.subr.mxu0 0.0
  %957 = vmatpush2.msra.mxu0 0.0
  %958 = vmatprep.subr.mxu0 0.0
  %959 = vmatpush2.msra.mxu0 0.0
  %960 = vmatprep.subr.mxu0 0.0
  %961 = vmatpush2.msra.mxu0 0.0
  %962 = vmatprep.subr.mxu0 0.0
  %963 = vmatpush2.msra.mxu0 0.0
  %964 = vmatprep.subr.mxu0 0.0
  %965 = vmatpush2.msra.mxu0 0.0
  %966 = vmatprep.subr.mxu0 0.0
  %967 = vmatpush2.msra.mxu0 0.0
  %968 = vmatprep.subr.mxu0 0.0
  %969 = vmatpush2.msra.mxu0 0.0
  %970 = vmatprep.subr.mxu0 0.0
  %971 = vmatpush2.msra.mxu0 0.0
  %972 = vmatprep.mubr.f32.mxu0 0.0
  %973 = vmatmul.mubr.f32.gmra.mxu0 %v56
  %v974 = vpop.f32.mrf.mxu0
  %v975 = vadd.f32 0.0, %v974
  %v976 = vpop.f32.mrf.mxu0
  %v977 = vadd.f32 0.0, %v976
  %978 = vmatprep.mubr.f32.mxu0 0.0
  %979 = vmatmul.mubr.f32.gmra.mxu0 %v59
  %v980 = vpop.f32.mrf.mxu0
  %v981 = vadd.f32 0.0, %v980
  %v982 = vpop.f32.mrf.mxu0
  %v983 = vadd.f32 0.0, %v982
  %984 = vmatprep.mubr.f32.mxu0 0.0
  %985 = vmatmul.mubr.f32.gmra.mxu0 %v62
  %v986 = vpop.f32.mrf.mxu0
  %v987 = vadd.f32 0.0, %v986
  %v988 = vpop.f32.mrf.mxu0
  %v989 = vadd.f32 0.0, %v988
  %990 = vmatprep.mubr.f32.mxu0 0.0
  %991 = vmatmul.mubr.f32.gmra.mxu0 %v65
  %v992 = vpop.f32.mrf.mxu0
  %v993 = vadd.f32 0.0, %v992
  %v994 = vpop.f32.mrf.mxu0
  %v995 = vadd.f32 0.0, %v994
  %996 = vmatprep.mubr.f32.mxu0 0.0
  %997 = vmatmul.mubr.f32.gmra.mxu0 %v68
  %v998 = vpop.f32.mrf.mxu0
  %v999 = vadd.f32 0.0, %v998
  %v1000 = vpop.f32.mrf.mxu0
  %v1001 = vadd.f32 0.0, %v1000
  %1002 = vmatprep.mubr.f32.mxu0 0.0
  %1003 = vmatmul.mubr.f32.gmra.mxu0 %v71
  %v1004 = vpop.f32.mrf.mxu0
  %v1005 = vadd.f32 0.0, %v1004
  %v1006 = vpop.f32.mrf.mxu0
  %v1007 = vadd.f32 0.0, %v1006
  %1008 = vmatprep.mubr.f32.mxu0 0.0
  %1009 = vmatmul.mubr.f32.gmra.mxu0 %v74
  %v1010 = vpop.f32.mrf.mxu0
  %v1011 = vadd.f32 0.0, %v1010
  %v1012 = vpop.f32.mrf.mxu0
  %v1013 = vadd.f32 0.0, %v1012
  %1014 = vmatprep.mubr.f32.mxu0 0.0
  %1015 = vmatmul.mubr.f32.gmra.mxu0 %v77
  %v1016 = vpop.f32.mrf.mxu0
  %v1017 = vadd.f32 0.0, %v1016
  %v1018 = vpop.f32.mrf.mxu0
  %v1019 = vadd.f32 0.0, %v1018
  %1020 = vmatprep.mubr.f32.mxu0 0.0
  %1021 = vmatmul.mubr.f32.gmra.mxu0 %v80
  %v1022 = vpop.f32.mrf.mxu0
  %v1023 = vadd.f32 0.0, %v1022
  %v1024 = vpop.f32.mrf.mxu0
  %v1025 = vadd.f32 0.0, %v1024
  %1026 = vmatprep.mubr.f32.mxu0 0.0
  %1027 = vmatmul.mubr.f32.gmra.mxu0 %v83
  %v1028 = vpop.f32.mrf.mxu0
  %v1029 = vadd.f32 0.0, %v1028
  %v1030 = vpop.f32.mrf.mxu0
  %v1031 = vadd.f32 0.0, %v1030
  %1032 = vmatprep.mubr.f32.mxu0 0.0
  %1033 = vmatmul.mubr.f32.gmra.mxu0 %v86
  %v1034 = vpop.f32.mrf.mxu0
  %v1035 = vadd.f32 0.0, %v1034
  %v1036 = vpop.f32.mrf.mxu0
  %v1037 = vadd.f32 0.0, %v1036
  %1038 = vmatprep.mubr.f32.mxu0 0.0
  %1039 = vmatmul.mubr.f32.gmra.mxu0 %v89
  %v1040 = vpop.f32.mrf.mxu0
  %v1041 = vadd.f32 0.0, %v1040
  %v1042 = vpop.f32.mrf.mxu0
  %v1043 = vadd.f32 0.0, %v1042
  %1044 = vmatprep.mubr.f32.mxu0 0.0
  %1045 = vmatmul.mubr.f32.gmra.mxu0 %v92
  %v1046 = vpop.f32.mrf.mxu0
  %v1047 = vadd.f32 0.0, %v1046
  %v1048 = vpop.f32.mrf.mxu0
  %v1049 = vadd.f32 0.0, %v1048
  %1050 = vmatprep.mubr.f32.mxu0 0.0
  %1051 = vmatmul.mubr.f32.gmra.mxu0 %v95
  %v1052 = vpop.f32.mrf.mxu0
  %v1053 = vadd.f32 0.0, %v1052
  %v1054 = vpop.f32.mrf.mxu0
  %v1055 = vadd.f32 0.0, %v1054
  %1056 = vmatprep.mubr.f32.mxu0 0.0
  %1057 = vmatmul.mubr.f32.gmra.mxu0 %v98
  %v1058 = vpop.f32.mrf.mxu0
  %v1059 = vadd.f32 0.0, %v1058
  %v1060 = vpop.f32.mrf.mxu0
  %v1061 = vadd.f32 0.0, %v1060
  %1062 = vmatprep.mubr.f32.mxu0 0.0
  %1063 = vmatmul.mubr.f32.gmra.mxu0 %v101
  %v1064 = vpop.f32.mrf.mxu0
  %v1065 = vadd.f32 0.0, %v1064
  %v1066 = vpop.f32.mrf.mxu0
  %v1067 = vadd.f32 0.0, %v1066
  %1068 = vdwg.mxu0
  %v1069 = vmax.f32 %v170, %v176
  %v1070 = vmax.f32 %v1069, %v182
  %v1071 = vmax.f32 %v1070, %v188
  %v1072 = vmax.f32 %v1071, %v194
  %v1073 = vmax.f32 %v1072, %v200
  %v1074 = vmax.f32 %v1073, %v206
  %v1075 = vmax.f32 %v1074, %v212
  %v1076 = vmax.f32 %v1075, %v218
  %v1077 = vmax.f32 %v1076, %v224
  %v1078 = vmax.f32 %v1077, %v230
  %v1079 = vmax.f32 %v1078, %v236
  %v1080 = vmax.f32 %v1079, %v242
  %v1081 = vmax.f32 %v1080, %v248
  %v1082 = vmax.f32 %v1081, %v254
  %v1083 = vmax.f32 %v1082, %v260
  %v1084 = vrot.slane %v1083, 4
  %v1085 = vmax.f32 %v1083, %v1084
  %v1086 = vrot.slane %v1085, 2
  %v1087 = vmax.f32 %v1085, %v1086
  %v1088 = vrot.slane %v1087, 1
  %v1089 = vmax.f32 %v1087, %v1088
  %v1090 = vmax.f32 %v172, %v178
  %v1091 = vmax.f32 %v1090, %v184
  %v1092 = vmax.f32 %v1091, %v190
  %v1093 = vmax.f32 %v1092, %v196
  %v1094 = vmax.f32 %v1093, %v202
  %v1095 = vmax.f32 %v1094, %v208
  %v1096 = vmax.f32 %v1095, %v214
  %v1097 = vmax.f32 %v1096, %v220
  %v1098 = vmax.f32 %v1097, %v226
  %v1099 = vmax.f32 %v1098, %v232
  %v1100 = vmax.f32 %v1099, %v238
  %v1101 = vmax.f32 %v1100, %v244
  %v1102 = vmax.f32 %v1101, %v250
  %v1103 = vmax.f32 %v1102, %v256
  %v1104 = vmax.f32 %v1103, %v262
  %v1105 = vrot.slane %v1104, 4
  %v1106 = vmax.f32 %v1104, %v1105
  %v1107 = vrot.slane %v1106, 2
  %v1108 = vmax.f32 %v1106, %v1107
  %v1109 = vrot.slane %v1108, 1
  %v1110 = vmax.f32 %v1108, %v1109
  %v1111 = vmax.f32 %v331, %v337
  %v1112 = vmax.f32 %v1111, %v343
  %v1113 = vmax.f32 %v1112, %v349
  %v1114 = vmax.f32 %v1113, %v355
  %v1115 = vmax.f32 %v1114, %v361
  %v1116 = vmax.f32 %v1115, %v367
  %v1117 = vmax.f32 %v1116, %v373
  %v1118 = vmax.f32 %v1117, %v379
  %v1119 = vmax.f32 %v1118, %v385
  %v1120 = vmax.f32 %v1119, %v391
  %v1121 = vmax.f32 %v1120, %v397
  %v1122 = vmax.f32 %v1121, %v403
  %v1123 = vmax.f32 %v1122, %v409
  %v1124 = vmax.f32 %v1123, %v415
  %v1125 = vmax.f32 %v1124, %v421
  %v1126 = vrot.slane %v1125, 4
  %v1127 = vmax.f32 %v1125, %v1126
  %v1128 = vrot.slane %v1127, 2
  %v1129 = vmax.f32 %v1127, %v1128
  %v1130 = vrot.slane %v1129, 1
  %v1131 = vmax.f32 %v1129, %v1130
  %v1132 = vmax.f32 %v333, %v339
  %v1133 = vmax.f32 %v1132, %v345
  %v1134 = vmax.f32 %v1133, %v351
  %v1135 = vmax.f32 %v1134, %v357
  %v1136 = vmax.f32 %v1135, %v363
  %v1137 = vmax.f32 %v1136, %v369
  %v1138 = vmax.f32 %v1137, %v375
  %v1139 = vmax.f32 %v1138, %v381
  %v1140 = vmax.f32 %v1139, %v387
  %v1141 = vmax.f32 %v1140, %v393
  %v1142 = vmax.f32 %v1141, %v399
  %v1143 = vmax.f32 %v1142, %v405
  %v1144 = vmax.f32 %v1143, %v411
  %v1145 = vmax.f32 %v1144, %v417
  %v1146 = vmax.f32 %v1145, %v423
  %v1147 = vrot.slane %v1146, 4
  %v1148 = vmax.f32 %v1146, %v1147
  %v1149 = vrot.slane %v1148, 2
  %v1150 = vmax.f32 %v1148, %v1149
  %v1151 = vrot.slane %v1150, 1
  %v1152 = vmax.f32 %v1150, %v1151
  %v1153 = vmax.f32 %v492, %v498
  %v1154 = vmax.f32 %v1153, %v504
  %v1155 = vmax.f32 %v1154, %v510
  %v1156 = vmax.f32 %v1155, %v516
  %v1157 = vmax.f32 %v1156, %v522
  %v1158 = vmax.f32 %v1157, %v528
  %v1159 = vmax.f32 %v1158, %v534
  %v1160 = vmax.f32 %v1159, %v540
  %v1161 = vmax.f32 %v1160, %v546
  %v1162 = vmax.f32 %v1161, %v552
  %v1163 = vmax.f32 %v1162, %v558
  %v1164 = vmax.f32 %v1163, %v564
  %v1165 = vmax.f32 %v1164, %v570
  %v1166 = vmax.f32 %v1165, %v576
  %v1167 = vmax.f32 %v1166, %v582
  %v1168 = vrot.slane %v1167, 4
  %v1169 = vmax.f32 %v1167, %v1168
  %v1170 = vrot.slane %v1169, 2
  %v1171 = vmax.f32 %v1169, %v1170
  %v1172 = vrot.slane %v1171, 1
  %v1173 = vmax.f32 %v1171, %v1172
  %v1174 = vmax.f32 %v494, %v500
  %v1175 = vmax.f32 %v1174, %v506
  %v1176 = vmax.f32 %v1175, %v512
  %v1177 = vmax.f32 %v1176, %v518
  %v1178 = vmax.f32 %v1177, %v524
  %v1179 = vmax.f32 %v1178, %v530
  %v1180 = vmax.f32 %v1179, %v536
  %v1181 = vmax.f32 %v1180, %v542
  %v1182 = vmax.f32 %v1181, %v548
  %v1183 = vmax.f32 %v1182, %v554
  %v1184 = vmax.f32 %v1183, %v560
  %v1185 = vmax.f32 %v1184, %v566
  %v1186 = vmax.f32 %v1185, %v572
  %v1187 = vmax.f32 %v1186, %v578
  %v1188 = vmax.f32 %v1187, %v584
  %v1189 = vrot.slane %v1188, 4
  %v1190 = vmax.f32 %v1188, %v1189
  %v1191 = vrot.slane %v1190, 2
  %v1192 = vmax.f32 %v1190, %v1191
  %v1193 = vrot.slane %v1192, 1
  %v1194 = vmax.f32 %v1192, %v1193
  %v1195 = vmax.f32 %v653, %v659
  %v1196 = vmax.f32 %v1195, %v665
  %v1197 = vmax.f32 %v1196, %v671
  %v1198 = vmax.f32 %v1197, %v677
  %v1199 = vmax.f32 %v1198, %v683
  %v1200 = vmax.f32 %v1199, %v689
  %v1201 = vmax.f32 %v1200, %v695
  %v1202 = vmax.f32 %v1201, %v701
  %v1203 = vmax.f32 %v1202, %v707
  %v1204 = vmax.f32 %v1203, %v713
  %v1205 = vmax.f32 %v1204, %v719
  %v1206 = vmax.f32 %v1205, %v725
  %v1207 = vmax.f32 %v1206, %v731
  %v1208 = vmax.f32 %v1207, %v737
  %v1209 = vmax.f32 %v1208, %v743
  %v1210 = vrot.slane %v1209, 4
  %v1211 = vmax.f32 %v1209, %v1210
  %v1212 = vrot.slane %v1211, 2
  %v1213 = vmax.f32 %v1211, %v1212
  %v1214 = vrot.slane %v1213, 1
  %v1215 = vmax.f32 %v1213, %v1214
  %v1216 = vmax.f32 %v655, %v661
  %v1217 = vmax.f32 %v1216, %v667
  %v1218 = vmax.f32 %v1217, %v673
  %v1219 = vmax.f32 %v1218, %v679
  %v1220 = vmax.f32 %v1219, %v685
  %v1221 = vmax.f32 %v1220, %v691
  %v1222 = vmax.f32 %v1221, %v697
  %v1223 = vmax.f32 %v1222, %v703
  %v1224 = vmax.f32 %v1223, %v709
  %v1225 = vmax.f32 %v1224, %v715
  %v1226 = vmax.f32 %v1225, %v721
  %v1227 = vmax.f32 %v1226, %v727
  %v1228 = vmax.f32 %v1227, %v733
  %v1229 = vmax.f32 %v1228, %v739
  %v1230 = vmax.f32 %v1229, %v745
  %v1231 = vrot.slane %v1230, 4
  %v1232 = vmax.f32 %v1230, %v1231
  %v1233 = vrot.slane %v1232, 2
  %v1234 = vmax.f32 %v1232, %v1233
  %v1235 = vrot.slane %v1234, 1
  %v1236 = vmax.f32 %v1234, %v1235
  %v1237 = vmax.f32 %v814, %v820
  %v1238 = vmax.f32 %v1237, %v826
  %v1239 = vmax.f32 %v1238, %v832
  %v1240 = vmax.f32 %v1239, %v838
  %v1241 = vmax.f32 %v1240, %v844
  %v1242 = vmax.f32 %v1241, %v850
  %v1243 = vmax.f32 %v1242, %v856
  %v1244 = vmax.f32 %v1243, %v862
  %v1245 = vmax.f32 %v1244, %v868
  %v1246 = vmax.f32 %v1245, %v874
  %v1247 = vmax.f32 %v1246, %v880
  %v1248 = vmax.f32 %v1247, %v886
  %v1249 = vmax.f32 %v1248, %v892
  %v1250 = vmax.f32 %v1249, %v898
  %v1251 = vmax.f32 %v1250, %v904
  %v1252 = vrot.slane %v1251, 4
  %v1253 = vmax.f32 %v1251, %v1252
  %v1254 = vrot.slane %v1253, 2
  %v1255 = vmax.f32 %v1253, %v1254
  %v1256 = vrot.slane %v1255, 1
  %v1257 = vmax.f32 %v1255, %v1256
  %v1258 = vmax.f32 %v816, %v822
  %v1259 = vmax.f32 %v1258, %v828
  %v1260 = vmax.f32 %v1259, %v834
  %v1261 = vmax.f32 %v1260, %v840
  %v1262 = vmax.f32 %v1261, %v846
  %v1263 = vmax.f32 %v1262, %v852
  %v1264 = vmax.f32 %v1263, %v858
  %v1265 = vmax.f32 %v1264, %v864
  %v1266 = vmax.f32 %v1265, %v870
  %v1267 = vmax.f32 %v1266, %v876
  %v1268 = vmax.f32 %v1267, %v882
  %v1269 = vmax.f32 %v1268, %v888
  %v1270 = vmax.f32 %v1269, %v894
  %v1271 = vmax.f32 %v1270, %v900
  %v1272 = vmax.f32 %v1271, %v906
  %v1273 = vrot.slane %v1272, 4
  %v1274 = vmax.f32 %v1272, %v1273
  %v1275 = vrot.slane %v1274, 2
  %v1276 = vmax.f32 %v1274, %v1275
  %v1277 = vrot.slane %v1276, 1
  %v1278 = vmax.f32 %v1276, %v1277
  %v1279 = vmax.f32 %v975, %v981
  %v1280 = vmax.f32 %v1279, %v987
  %v1281 = vmax.f32 %v1280, %v993
  %v1282 = vmax.f32 %v1281, %v999
  %v1283 = vmax.f32 %v1282, %v1005
  %v1284 = vmax.f32 %v1283, %v1011
  %v1285 = vmax.f32 %v1284, %v1017
  %v1286 = vmax.f32 %v1285, %v1023
  %v1287 = vmax.f32 %v1286, %v1029
  %v1288 = vmax.f32 %v1287, %v1035
  %v1289 = vmax.f32 %v1288, %v1041
  %v1290 = vmax.f32 %v1289, %v1047
  %v1291 = vmax.f32 %v1290, %v1053
  %v1292 = vmax.f32 %v1291, %v1059
  %v1293 = vmax.f32 %v1292, %v1065
  %v1294 = vrot.slane %v1293, 4
  %v1295 = vmax.f32 %v1293, %v1294
  %v1296 = vrot.slane %v1295, 2
  %v1297 = vmax.f32 %v1295, %v1296
  %v1298 = vrot.slane %v1297, 1
  %v1299 = vmax.f32 %v1297, %v1298
  %v1300 = vmax.f32 %v977, %v983
  %v1301 = vmax.f32 %v1300, %v989
  %v1302 = vmax.f32 %v1301, %v995
  %v1303 = vmax.f32 %v1302, %v1001
  %v1304 = vmax.f32 %v1303, %v1007
  %v1305 = vmax.f32 %v1304, %v1013
  %v1306 = vmax.f32 %v1305, %v1019
  %v1307 = vmax.f32 %v1306, %v1025
  %v1308 = vmax.f32 %v1307, %v1031
  %v1309 = vmax.f32 %v1308, %v1037
  %v1310 = vmax.f32 %v1309, %v1043
  %v1311 = vmax.f32 %v1310, %v1049
  %v1312 = vmax.f32 %v1311, %v1055
  %v1313 = vmax.f32 %v1312, %v1061
  %v1314 = vmax.f32 %v1313, %v1067
  %v1315 = vrot.slane %v1314, 4
  %v1316 = vmax.f32 %v1314, %v1315
  %v1317 = vrot.slane %v1316, 2
  %v1318 = vmax.f32 %v1316, %v1317
  %v1319 = vrot.slane %v1318, 1
  %v1320 = vmax.f32 %v1318, %v1319
  %v1321 = vsub.f32 %v170, %v1089
  %v1322 = vsub.f32 %v172, %v1110
  %v1323 = vsub.f32 %v331, %v1131
  %v1324 = vsub.f32 %v333, %v1152
  %v1325 = vsub.f32 %v492, %v1173
  %v1326 = vsub.f32 %v494, %v1194
  %v1327 = vsub.f32 %v653, %v1215
  %v1328 = vsub.f32 %v655, %v1236
  %v1329 = vsub.f32 %v814, %v1257
  %v1330 = vsub.f32 %v816, %v1278
  %v1331 = vsub.f32 %v975, %v1299
  %v1332 = vsub.f32 %v977, %v1320
  %v1333 = vsub.f32 %v176, %v1089
  %v1334 = vsub.f32 %v178, %v1110
  %v1335 = vsub.f32 %v337, %v1131
  %v1336 = vsub.f32 %v339, %v1152
  %v1337 = vsub.f32 %v498, %v1173
  %v1338 = vsub.f32 %v500, %v1194
  %v1339 = vsub.f32 %v659, %v1215
  %v1340 = vsub.f32 %v661, %v1236
  %v1341 = vsub.f32 %v820, %v1257
  %v1342 = vsub.f32 %v822, %v1278
  %v1343 = vsub.f32 %v981, %v1299
  %v1344 = vsub.f32 %v983, %v1320
  %v1345 = vsub.f32 %v182, %v1089
  %v1346 = vsub.f32 %v184, %v1110
  %v1347 = vsub.f32 %v343, %v1131
  %v1348 = vsub.f32 %v345, %v1152
  %v1349 = vsub.f32 %v504, %v1173
  %v1350 = vsub.f32 %v506, %v1194
  %v1351 = vsub.f32 %v665, %v1215
  %v1352 = vsub.f32 %v667, %v1236
  %v1353 = vsub.f32 %v826, %v1257
  %v1354 = vsub.f32 %v828, %v1278
  %v1355 = vsub.f32 %v987, %v1299
  %v1356 = vsub.f32 %v989, %v1320
  %v1357 = vsub.f32 %v188, %v1089
  %v1358 = vsub.f32 %v190, %v1110
  %v1359 = vsub.f32 %v349, %v1131
  %v1360 = vsub.f32 %v351, %v1152
  %v1361 = vsub.f32 %v510, %v1173
  %v1362 = vsub.f32 %v512, %v1194
  %v1363 = vsub.f32 %v671, %v1215
  %v1364 = vsub.f32 %v673, %v1236
  %v1365 = vsub.f32 %v832, %v1257
  %v1366 = vsub.f32 %v834, %v1278
  %v1367 = vsub.f32 %v993, %v1299
  %v1368 = vsub.f32 %v995, %v1320
  %v1369 = vsub.f32 %v194, %v1089
  %v1370 = vsub.f32 %v196, %v1110
  %v1371 = vsub.f32 %v355, %v1131
  %v1372 = vsub.f32 %v357, %v1152
  %v1373 = vsub.f32 %v516, %v1173
  %v1374 = vsub.f32 %v518, %v1194
  %v1375 = vsub.f32 %v677, %v1215
  %v1376 = vsub.f32 %v679, %v1236
  %v1377 = vsub.f32 %v838, %v1257
  %v1378 = vsub.f32 %v840, %v1278
  %v1379 = vsub.f32 %v999, %v1299
  %v1380 = vsub.f32 %v1001, %v1320
  %v1381 = vsub.f32 %v200, %v1089
  %v1382 = vsub.f32 %v202, %v1110
  %v1383 = vsub.f32 %v361, %v1131
  %v1384 = vsub.f32 %v363, %v1152
  %v1385 = vsub.f32 %v522, %v1173
  %v1386 = vsub.f32 %v524, %v1194
  %v1387 = vsub.f32 %v683, %v1215
  %v1388 = vsub.f32 %v685, %v1236
  %v1389 = vsub.f32 %v844, %v1257
  %v1390 = vsub.f32 %v846, %v1278
  %v1391 = vsub.f32 %v1005, %v1299
  %v1392 = vsub.f32 %v1007, %v1320
  %v1393 = vsub.f32 %v206, %v1089
  %v1394 = vsub.f32 %v208, %v1110
  %v1395 = vsub.f32 %v367, %v1131
  %v1396 = vsub.f32 %v369, %v1152
  %v1397 = vsub.f32 %v528, %v1173
  %v1398 = vsub.f32 %v530, %v1194
  %v1399 = vsub.f32 %v689, %v1215
  %v1400 = vsub.f32 %v691, %v1236
  %v1401 = vsub.f32 %v850, %v1257
  %v1402 = vsub.f32 %v852, %v1278
  %v1403 = vsub.f32 %v1011, %v1299
  %v1404 = vsub.f32 %v1013, %v1320
  %v1405 = vsub.f32 %v212, %v1089
  %v1406 = vsub.f32 %v214, %v1110
  %v1407 = vsub.f32 %v373, %v1131
  %v1408 = vsub.f32 %v375, %v1152
  %v1409 = vsub.f32 %v534, %v1173
  %v1410 = vsub.f32 %v536, %v1194
  %v1411 = vsub.f32 %v695, %v1215
  %v1412 = vsub.f32 %v697, %v1236
  %v1413 = vsub.f32 %v856, %v1257
  %v1414 = vsub.f32 %v858, %v1278
  %v1415 = vsub.f32 %v1017, %v1299
  %v1416 = vsub.f32 %v1019, %v1320
  %v1417 = vsub.f32 %v218, %v1089
  %v1418 = vsub.f32 %v220, %v1110
  %v1419 = vsub.f32 %v379, %v1131
  %v1420 = vsub.f32 %v381, %v1152
  %v1421 = vsub.f32 %v540, %v1173
  %v1422 = vsub.f32 %v542, %v1194
  %v1423 = vsub.f32 %v701, %v1215
  %v1424 = vsub.f32 %v703, %v1236
  %v1425 = vsub.f32 %v862, %v1257
  %v1426 = vsub.f32 %v864, %v1278
  %v1427 = vsub.f32 %v1023, %v1299
  %v1428 = vsub.f32 %v1025, %v1320
  %v1429 = vsub.f32 %v224, %v1089
  %v1430 = vsub.f32 %v226, %v1110
  %v1431 = vsub.f32 %v385, %v1131
  %v1432 = vsub.f32 %v387, %v1152
  %v1433 = vsub.f32 %v546, %v1173
  %v1434 = vsub.f32 %v548, %v1194
  %v1435 = vsub.f32 %v707, %v1215
  %v1436 = vsub.f32 %v709, %v1236
  %v1437 = vsub.f32 %v868, %v1257
  %v1438 = vsub.f32 %v870, %v1278
  %v1439 = vsub.f32 %v1029, %v1299
  %v1440 = vsub.f32 %v1031, %v1320
  %v1441 = vsub.f32 %v230, %v1089
  %v1442 = vsub.f32 %v232, %v1110
  %v1443 = vsub.f32 %v391, %v1131
  %v1444 = vsub.f32 %v393, %v1152
  %v1445 = vsub.f32 %v552, %v1173
  %v1446 = vsub.f32 %v554, %v1194
  %v1447 = vsub.f32 %v713, %v1215
  %v1448 = vsub.f32 %v715, %v1236
  %v1449 = vsub.f32 %v874, %v1257
  %v1450 = vsub.f32 %v876, %v1278
  %v1451 = vsub.f32 %v1035, %v1299
  %v1452 = vsub.f32 %v1037, %v1320
  %v1453 = vsub.f32 %v236, %v1089
  %v1454 = vsub.f32 %v238, %v1110
  %v1455 = vsub.f32 %v397, %v1131
  %v1456 = vsub.f32 %v399, %v1152
  %v1457 = vsub.f32 %v558, %v1173
  %v1458 = vsub.f32 %v560, %v1194
  %v1459 = vsub.f32 %v719, %v1215
  %v1460 = vsub.f32 %v721, %v1236
  %v1461 = vsub.f32 %v880, %v1257
  %v1462 = vsub.f32 %v882, %v1278
  %v1463 = vsub.f32 %v1041, %v1299
  %v1464 = vsub.f32 %v1043, %v1320
  %v1465 = vsub.f32 %v242, %v1089
  %v1466 = vsub.f32 %v244, %v1110
  %v1467 = vsub.f32 %v403, %v1131
  %v1468 = vsub.f32 %v405, %v1152
  %v1469 = vsub.f32 %v564, %v1173
  %v1470 = vsub.f32 %v566, %v1194
  %v1471 = vsub.f32 %v725, %v1215
  %v1472 = vsub.f32 %v727, %v1236
  %v1473 = vsub.f32 %v886, %v1257
  %v1474 = vsub.f32 %v888, %v1278
  %v1475 = vsub.f32 %v1047, %v1299
  %v1476 = vsub.f32 %v1049, %v1320
  %v1477 = vsub.f32 %v248, %v1089
  %v1478 = vsub.f32 %v250, %v1110
  %v1479 = vsub.f32 %v409, %v1131
  %v1480 = vsub.f32 %v411, %v1152
  %v1481 = vsub.f32 %v570, %v1173
  %v1482 = vsub.f32 %v572, %v1194
  %v1483 = vsub.f32 %v731, %v1215
  %v1484 = vsub.f32 %v733, %v1236
  %v1485 = vsub.f32 %v892, %v1257
  %v1486 = vsub.f32 %v894, %v1278
  %v1487 = vsub.f32 %v1053, %v1299
  %v1488 = vsub.f32 %v1055, %v1320
  %v1489 = vsub.f32 %v254, %v1089
  %v1490 = vsub.f32 %v256, %v1110
  %v1491 = vsub.f32 %v415, %v1131
  %v1492 = vsub.f32 %v417, %v1152
  %v1493 = vsub.f32 %v576, %v1173
  %v1494 = vsub.f32 %v578, %v1194
  %v1495 = vsub.f32 %v737, %v1215
  %v1496 = vsub.f32 %v739, %v1236
  %v1497 = vsub.f32 %v898, %v1257
  %v1498 = vsub.f32 %v900, %v1278
  %v1499 = vsub.f32 %v1059, %v1299
  %v1500 = vsub.f32 %v1061, %v1320
  %v1501 = vsub.f32 %v260, %v1089
  %v1502 = vsub.f32 %v262, %v1110
  %v1503 = vsub.f32 %v421, %v1131
  %v1504 = vsub.f32 %v423, %v1152
  %v1505 = vsub.f32 %v582, %v1173
  %v1506 = vsub.f32 %v584, %v1194
  %v1507 = vsub.f32 %v743, %v1215
  %v1508 = vsub.f32 %v745, %v1236
  %v1509 = vsub.f32 %v904, %v1257
  %v1510 = vsub.f32 %v906, %v1278
  %v1511 = vsub.f32 %v1065, %v1299
  %v1512 = vsub.f32 %v1067, %v1320
  %v1513 = vmul.f32 %v1321, 1.442695
  %v1514 = vpow.pop %v1513
  %v1515 = vmul.f32 %v1322, 1.442695
  %v1516 = vpow.pop %v1515
  %v1517 = vmul.f32 %v1323, 1.442695
  %v1518 = vpow.pop %v1517
  %v1519 = vmul.f32 %v1324, 1.442695
  %v1520 = vpow.pop %v1519
  %v1521 = vmul.f32 %v1325, 1.442695
  %v1522 = vpow.pop %v1521
  %v1523 = vmul.f32 %v1326, 1.442695
  %v1524 = vpow.pop %v1523
  %v1525 = vmul.f32 %v1327, 1.442695
  %v1526 = vpow.pop %v1525
  %v1527 = vmul.f32 %v1328, 1.442695
  %v1528 = vpow.pop %v1527
  %v1529 = vmul.f32 %v1329, 1.442695
  %v1530 = vpow.pop %v1529
  %v1531 = vmul.f32 %v1330, 1.442695
  %v1532 = vpow.pop %v1531
  %v1533 = vmul.f32 %v1331, 1.442695
  %v1534 = vpow.pop %v1533
  %v1535 = vmul.f32 %v1332, 1.442695
  %v1536 = vpow.pop %v1535
  %v1537 = vmul.f32 %v1333, 1.442695
  %v1538 = vpow.pop %v1537
  %v1539 = vmul.f32 %v1334, 1.442695
  %v1540 = vpow.pop %v1539
  %v1541 = vmul.f32 %v1335, 1.442695
  %v1542 = vpow.pop %v1541
  %v1543 = vmul.f32 %v1336, 1.442695
  %v1544 = vpow.pop %v1543
  %v1545 = vmul.f32 %v1337, 1.442695
  %v1546 = vpow.pop %v1545
  %v1547 = vmul.f32 %v1338, 1.442695
  %v1548 = vpow.pop %v1547
  %v1549 = vmul.f32 %v1339, 1.442695
  %v1550 = vpow.pop %v1549
  %v1551 = vmul.f32 %v1340, 1.442695
  %v1552 = vpow.pop %v1551
  %v1553 = vmul.f32 %v1341, 1.442695
  %v1554 = vpow.pop %v1553
  %v1555 = vmul.f32 %v1342, 1.442695
  %v1556 = vpow.pop %v1555
  %v1557 = vmul.f32 %v1343, 1.442695
  %v1558 = vpow.pop %v1557
  %v1559 = vmul.f32 %v1344, 1.442695
  %v1560 = vpow.pop %v1559
  %v1561 = vmul.f32 %v1345, 1.442695
  %v1562 = vpow.pop %v1561
  %v1563 = vmul.f32 %v1346, 1.442695
  %v1564 = vpow.pop %v1563
  %v1565 = vmul.f32 %v1347, 1.442695
  %v1566 = vpow.pop %v1565
  %v1567 = vmul.f32 %v1348, 1.442695
  %v1568 = vpow.pop %v1567
  %v1569 = vmul.f32 %v1349, 1.442695
  %v1570 = vpow.pop %v1569
  %v1571 = vmul.f32 %v1350, 1.442695
  %v1572 = vpow.pop %v1571
  %v1573 = vmul.f32 %v1351, 1.442695
  %v1574 = vpow.pop %v1573
  %v1575 = vmul.f32 %v1352, 1.442695
  %v1576 = vpow.pop %v1575
  %v1577 = vmul.f32 %v1353, 1.442695
  %v1578 = vpow.pop %v1577
  %v1579 = vmul.f32 %v1354, 1.442695
  %v1580 = vpow.pop %v1579
  %v1581 = vmul.f32 %v1355, 1.442695
  %v1582 = vpow.pop %v1581
  %v1583 = vmul.f32 %v1356, 1.442695
  %v1584 = vpow.pop %v1583
  %v1585 = vmul.f32 %v1357, 1.442695
  %v1586 = vpow.pop %v1585
  %v1587 = vmul.f32 %v1358, 1.442695
  %v1588 = vpow.pop %v1587
  %v1589 = vmul.f32 %v1359, 1.442695
  %v1590 = vpow.pop %v1589
  %v1591 = vmul.f32 %v1360, 1.442695
  %v1592 = vpow.pop %v1591
  %v1593 = vmul.f32 %v1361, 1.442695
  %v1594 = vpow.pop %v1593
  %v1595 = vmul.f32 %v1362, 1.442695
  %v1596 = vpow.pop %v1595
  %v1597 = vmul.f32 %v1363, 1.442695
  %v1598 = vpow.pop %v1597
  %v1599 = vmul.f32 %v1364, 1.442695
  %v1600 = vpow.pop %v1599
  %v1601 = vmul.f32 %v1365, 1.442695
  %v1602 = vpow.pop %v1601
  %v1603 = vmul.f32 %v1366, 1.442695
  %v1604 = vpow.pop %v1603
  %v1605 = vmul.f32 %v1367, 1.442695
  %v1606 = vpow.pop %v1605
  %v1607 = vmul.f32 %v1368, 1.442695
  %v1608 = vpow.pop %v1607
  %v1609 = vmul.f32 %v1369, 1.442695
  %v1610 = vpow.pop %v1609
  %v1611 = vmul.f32 %v1370, 1.442695
  %v1612 = vpow.pop %v1611
  %v1613 = vmul.f32 %v1371, 1.442695
  %v1614 = vpow.pop %v1613
  %v1615 = vmul.f32 %v1372, 1.442695
  %v1616 = vpow.pop %v1615
  %v1617 = vmul.f32 %v1373, 1.442695
  %v1618 = vpow.pop %v1617
  %v1619 = vmul.f32 %v1374, 1.442695
  %v1620 = vpow.pop %v1619
  %v1621 = vmul.f32 %v1375, 1.442695
  %v1622 = vpow.pop %v1621
  %v1623 = vmul.f32 %v1376, 1.442695
  %v1624 = vpow.pop %v1623
  %v1625 = vmul.f32 %v1377, 1.442695
  %v1626 = vpow.pop %v1625
  %v1627 = vmul.f32 %v1378, 1.442695
  %v1628 = vpow.pop %v1627
  %v1629 = vmul.f32 %v1379, 1.442695
  %v1630 = vpow.pop %v1629
  %v1631 = vmul.f32 %v1380, 1.442695
  %v1632 = vpow.pop %v1631
  %v1633 = vmul.f32 %v1381, 1.442695
  %v1634 = vpow.pop %v1633
  %v1635 = vmul.f32 %v1382, 1.442695
  %v1636 = vpow.pop %v1635
  %v1637 = vmul.f32 %v1383, 1.442695
  %v1638 = vpow.pop %v1637
  %v1639 = vmul.f32 %v1384, 1.442695
  %v1640 = vpow.pop %v1639
  %v1641 = vmul.f32 %v1385, 1.442695
  %v1642 = vpow.pop %v1641
  %v1643 = vmul.f32 %v1386, 1.442695
  %v1644 = vpow.pop %v1643
  %v1645 = vmul.f32 %v1387, 1.442695
  %v1646 = vpow.pop %v1645
  %v1647 = vmul.f32 %v1388, 1.442695
  %v1648 = vpow.pop %v1647
  %v1649 = vmul.f32 %v1389, 1.442695
  %v1650 = vpow.pop %v1649
  %v1651 = vmul.f32 %v1390, 1.442695
  %v1652 = vpow.pop %v1651
  %v1653 = vmul.f32 %v1391, 1.442695
  %v1654 = vpow.pop %v1653
  %v1655 = vmul.f32 %v1392, 1.442695
  %v1656 = vpow.pop %v1655
  %v1657 = vmul.f32 %v1393, 1.442695
  %v1658 = vpow.pop %v1657
  %v1659 = vmul.f32 %v1394, 1.442695
  %v1660 = vpow.pop %v1659
  %v1661 = vmul.f32 %v1395, 1.442695
  %v1662 = vpow.pop %v1661
  %v1663 = vmul.f32 %v1396, 1.442695
  %v1664 = vpow.pop %v1663
  %v1665 = vmul.f32 %v1397, 1.442695
  %v1666 = vpow.pop %v1665
  %v1667 = vmul.f32 %v1398, 1.442695
  %v1668 = vpow.pop %v1667
  %v1669 = vmul.f32 %v1399, 1.442695
  %v1670 = vpow.pop %v1669
  %v1671 = vmul.f32 %v1400, 1.442695
  %v1672 = vpow.pop %v1671
  %v1673 = vmul.f32 %v1401, 1.442695
  %v1674 = vpow.pop %v1673
  %v1675 = vmul.f32 %v1402, 1.442695
  %v1676 = vpow.pop %v1675
  %v1677 = vmul.f32 %v1403, 1.442695
  %v1678 = vpow.pop %v1677
  %v1679 = vmul.f32 %v1404, 1.442695
  %v1680 = vpow.pop %v1679
  %v1681 = vmul.f32 %v1405, 1.442695
  %v1682 = vpow.pop %v1681
  %v1683 = vmul.f32 %v1406, 1.442695
  %v1684 = vpow.pop %v1683
  %v1685 = vmul.f32 %v1407, 1.442695
  %v1686 = vpow.pop %v1685
  %v1687 = vmul.f32 %v1408, 1.442695
  %v1688 = vpow.pop %v1687
  %v1689 = vmul.f32 %v1409, 1.442695
  %v1690 = vpow.pop %v1689
  %v1691 = vmul.f32 %v1410, 1.442695
  %v1692 = vpow.pop %v1691
  %v1693 = vmul.f32 %v1411, 1.442695
  %v1694 = vpow.pop %v1693
  %v1695 = vmul.f32 %v1412, 1.442695
  %v1696 = vpow.pop %v1695
  %v1697 = vmul.f32 %v1413, 1.442695
  %v1698 = vpow.pop %v1697
  %v1699 = vmul.f32 %v1414, 1.442695
  %v1700 = vpow.pop %v1699
  %v1701 = vmul.f32 %v1415, 1.442695
  %v1702 = vpow.pop %v1701
  %v1703 = vmul.f32 %v1416, 1.442695
  %v1704 = vpow.pop %v1703
  %v1705 = vmul.f32 %v1417, 1.442695
  %v1706 = vpow.pop %v1705
  %v1707 = vmul.f32 %v1418, 1.442695
  %v1708 = vpow.pop %v1707
  %v1709 = vmul.f32 %v1419, 1.442695
  %v1710 = vpow.pop %v1709
  %v1711 = vmul.f32 %v1420, 1.442695
  %v1712 = vpow.pop %v1711
  %v1713 = vmul.f32 %v1421, 1.442695
  %v1714 = vpow.pop %v1713
  %v1715 = vmul.f32 %v1422, 1.442695
  %v1716 = vpow.pop %v1715
  %v1717 = vmul.f32 %v1423, 1.442695
  %v1718 = vpow.pop %v1717
  %v1719 = vmul.f32 %v1424, 1.442695
  %v1720 = vpow.pop %v1719
  %v1721 = vmul.f32 %v1425, 1.442695
  %v1722 = vpow.pop %v1721
  %v1723 = vmul.f32 %v1426, 1.442695
  %v1724 = vpow.pop %v1723
  %v1725 = vmul.f32 %v1427, 1.442695
  %v1726 = vpow.pop %v1725
  %v1727 = vmul.f32 %v1428, 1.442695
  %v1728 = vpow.pop %v1727
  %v1729 = vmul.f32 %v1429, 1.442695
  %v1730 = vpow.pop %v1729
  %v1731 = vmul.f32 %v1430, 1.442695
  %v1732 = vpow.pop %v1731
  %v1733 = vmul.f32 %v1431, 1.442695
  %v1734 = vpow.pop %v1733
  %v1735 = vmul.f32 %v1432, 1.442695
  %v1736 = vpow.pop %v1735
  %v1737 = vmul.f32 %v1433, 1.442695
  %v1738 = vpow.pop %v1737
  %v1739 = vmul.f32 %v1434, 1.442695
  %v1740 = vpow.pop %v1739
  %v1741 = vmul.f32 %v1435, 1.442695
  %v1742 = vpow.pop %v1741
  %v1743 = vmul.f32 %v1436, 1.442695
  %v1744 = vpow.pop %v1743
  %v1745 = vmul.f32 %v1437, 1.442695
  %v1746 = vpow.pop %v1745
  %v1747 = vmul.f32 %v1438, 1.442695
  %v1748 = vpow.pop %v1747
  %v1749 = vmul.f32 %v1439, 1.442695
  %v1750 = vpow.pop %v1749
  %v1751 = vmul.f32 %v1440, 1.442695
  %v1752 = vpow.pop %v1751
  %v1753 = vmul.f32 %v1441, 1.442695
  %v1754 = vpow.pop %v1753
  %v1755 = vmul.f32 %v1442, 1.442695
  %v1756 = vpow.pop %v1755
  %v1757 = vmul.f32 %v1443, 1.442695
  %v1758 = vpow.pop %v1757
  %v1759 = vmul.f32 %v1444, 1.442695
  %v1760 = vpow.pop %v1759
  %v1761 = vmul.f32 %v1445, 1.442695
  %v1762 = vpow.pop %v1761
  %v1763 = vmul.f32 %v1446, 1.442695
  %v1764 = vpow.pop %v1763
  %v1765 = vmul.f32 %v1447, 1.442695
  %v1766 = vpow.pop %v1765
  %v1767 = vmul.f32 %v1448, 1.442695
  %v1768 = vpow.pop %v1767
  %v1769 = vmul.f32 %v1449, 1.442695
  %v1770 = vpow.pop %v1769
  %v1771 = vmul.f32 %v1450, 1.442695
  %v1772 = vpow.pop %v1771
  %v1773 = vmul.f32 %v1451, 1.442695
  %v1774 = vpow.pop %v1773
  %v1775 = vmul.f32 %v1452, 1.442695
  %v1776 = vpow.pop %v1775
  %v1777 = vmul.f32 %v1453, 1.442695
  %v1778 = vpow.pop %v1777
  %v1779 = vmul.f32 %v1454, 1.442695
  %v1780 = vpow.pop %v1779
  %v1781 = vmul.f32 %v1455, 1.442695
  %v1782 = vpow.pop %v1781
  %v1783 = vmul.f32 %v1456, 1.442695
  %v1784 = vpow.pop %v1783
  %v1785 = vmul.f32 %v1457, 1.442695
  %v1786 = vpow.pop %v1785
  %v1787 = vmul.f32 %v1458, 1.442695
  %v1788 = vpow.pop %v1787
  %v1789 = vmul.f32 %v1459, 1.442695
  %v1790 = vpow.pop %v1789
  %v1791 = vmul.f32 %v1460, 1.442695
  %v1792 = vpow.pop %v1791
  %v1793 = vmul.f32 %v1461, 1.442695
  %v1794 = vpow.pop %v1793
  %v1795 = vmul.f32 %v1462, 1.442695
  %v1796 = vpow.pop %v1795
  %v1797 = vmul.f32 %v1463, 1.442695
  %v1798 = vpow.pop %v1797
  %v1799 = vmul.f32 %v1464, 1.442695
  %v1800 = vpow.pop %v1799
  %v1801 = vmul.f32 %v1465, 1.442695
  %v1802 = vpow.pop %v1801
  %v1803 = vmul.f32 %v1466, 1.442695
  %v1804 = vpow.pop %v1803
  %v1805 = vmul.f32 %v1467, 1.442695
  %v1806 = vpow.pop %v1805
  %v1807 = vmul.f32 %v1468, 1.442695
  %v1808 = vpow.pop %v1807
  %v1809 = vmul.f32 %v1469, 1.442695
  %v1810 = vpow.pop %v1809
  %v1811 = vmul.f32 %v1470, 1.442695
  %v1812 = vpow.pop %v1811
  %v1813 = vmul.f32 %v1471, 1.442695
  %v1814 = vpow.pop %v1813
  %v1815 = vmul.f32 %v1472, 1.442695
  %v1816 = vpow.pop %v1815
  %v1817 = vmul.f32 %v1473, 1.442695
  %v1818 = vpow.pop %v1817
  %v1819 = vmul.f32 %v1474, 1.442695
  %v1820 = vpow.pop %v1819
  %v1821 = vmul.f32 %v1475, 1.442695
  %v1822 = vpow.pop %v1821
  %v1823 = vmul.f32 %v1476, 1.442695
  %v1824 = vpow.pop %v1823
  %v1825 = vmul.f32 %v1477, 1.442695
  %v1826 = vpow.pop %v1825
  %v1827 = vmul.f32 %v1478, 1.442695
  %v1828 = vpow.pop %v1827
  %v1829 = vmul.f32 %v1479, 1.442695
  %v1830 = vpow.pop %v1829
  %v1831 = vmul.f32 %v1480, 1.442695
  %v1832 = vpow.pop %v1831
  %v1833 = vmul.f32 %v1481, 1.442695
  %v1834 = vpow.pop %v1833
  %v1835 = vmul.f32 %v1482, 1.442695
  %v1836 = vpow.pop %v1835
  %v1837 = vmul.f32 %v1483, 1.442695
  %v1838 = vpow.pop %v1837
  %v1839 = vmul.f32 %v1484, 1.442695
  %v1840 = vpow.pop %v1839
  %v1841 = vmul.f32 %v1485, 1.442695
  %v1842 = vpow.pop %v1841
  %v1843 = vmul.f32 %v1486, 1.442695
  %v1844 = vpow.pop %v1843
  %v1845 = vmul.f32 %v1487, 1.442695
  %v1846 = vpow.pop %v1845
  %v1847 = vmul.f32 %v1488, 1.442695
  %v1848 = vpow.pop %v1847
  %v1849 = vmul.f32 %v1489, 1.442695
  %v1850 = vpow.pop %v1849
  %v1851 = vmul.f32 %v1490, 1.442695
  %v1852 = vpow.pop %v1851
  %v1853 = vmul.f32 %v1491, 1.442695
  %v1854 = vpow.pop %v1853
  %v1855 = vmul.f32 %v1492, 1.442695
  %v1856 = vpow.pop %v1855
  %v1857 = vmul.f32 %v1493, 1.442695
  %v1858 = vpow.pop %v1857
  %v1859 = vmul.f32 %v1494, 1.442695
  %v1860 = vpow.pop %v1859
  %v1861 = vmul.f32 %v1495, 1.442695
  %v1862 = vpow.pop %v1861
  %v1863 = vmul.f32 %v1496, 1.442695
  %v1864 = vpow.pop %v1863
  %v1865 = vmul.f32 %v1497, 1.442695
  %v1866 = vpow.pop %v1865
  %v1867 = vmul.f32 %v1498, 1.442695
  %v1868 = vpow.pop %v1867
  %v1869 = vmul.f32 %v1499, 1.442695
  %v1870 = vpow.pop %v1869
  %v1871 = vmul.f32 %v1500, 1.442695
  %v1872 = vpow.pop %v1871
  %v1873 = vmul.f32 %v1501, 1.442695
  %v1874 = vpow.pop %v1873
  %v1875 = vmul.f32 %v1502, 1.442695
  %v1876 = vpow.pop %v1875
  %v1877 = vmul.f32 %v1503, 1.442695
  %v1878 = vpow.pop %v1877
  %v1879 = vmul.f32 %v1504, 1.442695
  %v1880 = vpow.pop %v1879
  %v1881 = vmul.f32 %v1505, 1.442695
  %v1882 = vpow.pop %v1881
  %v1883 = vmul.f32 %v1506, 1.442695
  %v1884 = vpow.pop %v1883
  %v1885 = vmul.f32 %v1507, 1.442695
  %v1886 = vpow.pop %v1885
  %v1887 = vmul.f32 %v1508, 1.442695
  %v1888 = vpow.pop %v1887
  %v1889 = vmul.f32 %v1509, 1.442695
  %v1890 = vpow.pop %v1889
  %v1891 = vmul.f32 %v1510, 1.442695
  %v1892 = vpow.pop %v1891
  %v1893 = vmul.f32 %v1511, 1.442695
  %v1894 = vpow.pop %v1893
  %v1895 = vmul.f32 %v1512, 1.442695
  %v1896 = vpow.pop %v1895
  %v1897 = vld [vmem:[%s2] sm:$0xff]
  %1898 = vmatprep.subr.mxu0 %v1876
  %1899 = vmatpush1.msra.mxu0 %v1874
  %1900 = vmatprep.subr.mxu0 %v1852
  %1901 = vmatpush1.msra.mxu0 %v1850
  %1902 = vmatprep.subr.mxu0 %v1828
  %1903 = vmatpush1.msra.mxu0 %v1826
  %1904 = vmatprep.subr.mxu0 %v1804
  %1905 = vmatpush1.msra.mxu0 %v1802
  %1906 = vmatprep.subr.mxu0 %v1780
  %1907 = vmatpush1.msra.mxu0 %v1778
  %1908 = vmatprep.subr.mxu0 %v1756
  %1909 = vmatpush1.msra.mxu0 %v1754
  %1910 = vmatprep.subr.mxu0 %v1732
  %1911 = vmatpush1.msra.mxu0 %v1730
  %1912 = vmatprep.subr.mxu0 %v1708
  %1913 = vmatpush1.msra.mxu0 %v1706
  %1914 = vmatprep.subr.mxu0 %v1684
  %1915 = vmatpush1.msra.mxu0 %v1682
  %1916 = vmatprep.subr.mxu0 %v1660
  %1917 = vmatpush1.msra.mxu0 %v1658
  %1918 = vmatprep.subr.mxu0 %v1636
  %1919 = vmatpush1.msra.mxu0 %v1634
  %1920 = vmatprep.subr.mxu0 %v1612
  %1921 = vmatpush1.msra.mxu0 %v1610
  %1922 = vmatprep.subr.mxu0 %v1588
  %1923 = vmatpush1.msra.mxu0 %v1586
  %1924 = vmatprep.subr.mxu0 %v1564
  %1925 = vmatpush1.msra.mxu0 %v1562
  %1926 = vmatprep.subr.mxu0 %v1540
  %1927 = vmatpush1.msra.mxu0 %v1538
  %1928 = vmatprep.subr.mxu0 %v1516
  %1929 = vmatpush1.msra.mxu0 %v1514
  %1930 = vmatprep.subr.mxu0 0.0
  %1931 = vmatpush2.msra.mxu0 0.0
  %1932 = vmatprep.subr.mxu0 0.0
  %1933 = vmatpush2.msra.mxu0 0.0
  %1934 = vmatprep.subr.mxu0 0.0
  %1935 = vmatpush2.msra.mxu0 0.0
  %1936 = vmatprep.subr.mxu0 0.0
  %1937 = vmatpush2.msra.mxu0 0.0
  %1938 = vmatprep.subr.mxu0 0.0
  %1939 = vmatpush2.msra.mxu0 0.0
  %1940 = vmatprep.subr.mxu0 0.0
  %1941 = vmatpush2.msra.mxu0 0.0
  %1942 = vmatprep.subr.mxu0 0.0
  %1943 = vmatpush2.msra.mxu0 0.0
  %1944 = vmatprep.subr.mxu0 0.0
  %1945 = vmatpush2.msra.mxu0 0.0
  %1946 = vmatprep.subr.mxu0 0.0
  %1947 = vmatpush2.msra.mxu0 0.0
  %1948 = vmatprep.subr.mxu0 0.0
  %1949 = vmatpush2.msra.mxu0 0.0
  %1950 = vmatprep.subr.mxu0 0.0
  %1951 = vmatpush2.msra.mxu0 0.0
  %1952 = vmatprep.subr.mxu0 0.0
  %1953 = vmatpush2.msra.mxu0 0.0
  %1954 = vmatprep.subr.mxu0 0.0
  %1955 = vmatpush2.msra.mxu0 0.0
  %1956 = vmatprep.subr.mxu0 0.0
  %1957 = vmatpush2.msra.mxu0 0.0
  %1958 = vmatprep.subr.mxu0 0.0
  %1959 = vmatpush2.msra.mxu0 0.0
  %1960 = vmatprep.subr.mxu0 0.0
  %1961 = vmatpush2.msra.mxu0 0.0
  %1962 = vmatprep.mubr.f32.mxu0 0.0
  %1963 = vmatmul.mubr.f32.gmra.mxu0 %v1897
  %v1964 = vpop.f32.mrf.mxu0
  %v1965 = vadd.f32 0.0, %v1964
  %v1966 = vpop.f32.mrf.mxu0
  %v1967 = vadd.f32 0.0, %v1966
  %1968 = vdwg.mxu0
  %1969 = vmatprep.subr.mxu0 %v1880
  %1970 = vmatpush1.msra.mxu0 %v1878
  %1971 = vmatprep.subr.mxu0 %v1856
  %1972 = vmatpush1.msra.mxu0 %v1854
  %1973 = vmatprep.subr.mxu0 %v1832
  %1974 = vmatpush1.msra.mxu0 %v1830
  %1975 = vmatprep.subr.mxu0 %v1808
  %1976 = vmatpush1.msra.mxu0 %v1806
  %1977 = vmatprep.subr.mxu0 %v1784
  %1978 = vmatpush1.msra.mxu0 %v1782
  %1979 = vmatprep.subr.mxu0 %v1760
  %1980 = vmatpush1.msra.mxu0 %v1758
  %1981 = vmatprep.subr.mxu0 %v1736
  %1982 = vmatpush1.msra.mxu0 %v1734
  %1983 = vmatprep.subr.mxu0 %v1712
  %1984 = vmatpush1.msra.mxu0 %v1710
  %1985 = vmatprep.subr.mxu0 %v1688
  %1986 = vmatpush1.msra.mxu0 %v1686
  %1987 = vmatprep.subr.mxu0 %v1664
  %1988 = vmatpush1.msra.mxu0 %v1662
  %1989 = vmatprep.subr.mxu0 %v1640
  %1990 = vmatpush1.msra.mxu0 %v1638
  %1991 = vmatprep.subr.mxu0 %v1616
  %1992 = vmatpush1.msra.mxu0 %v1614
  %1993 = vmatprep.subr.mxu0 %v1592
  %1994 = vmatpush1.msra.mxu0 %v1590
  %1995 = vmatprep.subr.mxu0 %v1568
  %1996 = vmatpush1.msra.mxu0 %v1566
  %1997 = vmatprep.subr.mxu0 %v1544
  %1998 = vmatpush1.msra.mxu0 %v1542
  %1999 = vmatprep.subr.mxu0 %v1520
  %2000 = vmatpush1.msra.mxu0 %v1518
  %2001 = vmatprep.subr.mxu0 0.0
  %2002 = vmatpush2.msra.mxu0 0.0
  %2003 = vmatprep.subr.mxu0 0.0
  %2004 = vmatpush2.msra.mxu0 0.0
  %2005 = vmatprep.subr.mxu0 0.0
  %2006 = vmatpush2.msra.mxu0 0.0
  %2007 = vmatprep.subr.mxu0 0.0
  %2008 = vmatpush2.msra.mxu0 0.0
  %2009 = vmatprep.subr.mxu0 0.0
  %2010 = vmatpush2.msra.mxu0 0.0
  %2011 = vmatprep.subr.mxu0 0.0
  %2012 = vmatpush2.msra.mxu0 0.0
  %2013 = vmatprep.subr.mxu0 0.0
  %2014 = vmatpush2.msra.mxu0 0.0
  %2015 = vmatprep.subr.mxu0 0.0
  %2016 = vmatpush2.msra.mxu0 0.0
  %2017 = vmatprep.subr.mxu0 0.0
  %2018 = vmatpush2.msra.mxu0 0.0
  %2019 = vmatprep.subr.mxu0 0.0
  %2020 = vmatpush2.msra.mxu0 0.0
  %2021 = vmatprep.subr.mxu0 0.0
  %2022 = vmatpush2.msra.mxu0 0.0
  %2023 = vmatprep.subr.mxu0 0.0
  %2024 = vmatpush2.msra.mxu0 0.0
  %2025 = vmatprep.subr.mxu0 0.0
  %2026 = vmatpush2.msra.mxu0 0.0
  %2027 = vmatprep.subr.mxu0 0.0
  %2028 = vmatpush2.msra.mxu0 0.0
  %2029 = vmatprep.subr.mxu0 0.0
  %2030 = vmatpush2.msra.mxu0 0.0
  %2031 = vmatprep.subr.mxu0 0.0
  %2032 = vmatpush2.msra.mxu0 0.0
  %2033 = vmatprep.mubr.f32.mxu0 0.0
  %2034 = vmatmul.mubr.f32.gmra.mxu0 %v1897
  %v2035 = vpop.f32.mrf.mxu0
  %v2036 = vadd.f32 0.0, %v2035
  %v2037 = vpop.f32.mrf.mxu0
  %v2038 = vadd.f32 0.0, %v2037
  %2039 = vdwg.mxu0
  %2040 = vmatprep.subr.mxu0 %v1884
  %2041 = vmatpush1.msra.mxu0 %v1882
  %2042 = vmatprep.subr.mxu0 %v1860
  %2043 = vmatpush1.msra.mxu0 %v1858
  %2044 = vmatprep.subr.mxu0 %v1836
  %2045 = vmatpush1.msra.mxu0 %v1834
  %2046 = vmatprep.subr.mxu0 %v1812
  %2047 = vmatpush1.msra.mxu0 %v1810
  %2048 = vmatprep.subr.mxu0 %v1788
  %2049 = vmatpush1.msra.mxu0 %v1786
  %2050 = vmatprep.subr.mxu0 %v1764
  %2051 = vmatpush1.msra.mxu0 %v1762
  %2052 = vmatprep.subr.mxu0 %v1740
  %2053 = vmatpush1.msra.mxu0 %v1738
  %2054 = vmatprep.subr.mxu0 %v1716
  %2055 = vmatpush1.msra.mxu0 %v1714
  %2056 = vmatprep.subr.mxu0 %v1692
  %2057 = vmatpush1.msra.mxu0 %v1690
  %2058 = vmatprep.subr.mxu0 %v1668
  %2059 = vmatpush1.msra.mxu0 %v1666
  %2060 = vmatprep.subr.mxu0 %v1644
  %2061 = vmatpush1.msra.mxu0 %v1642
  %2062 = vmatprep.subr.mxu0 %v1620
  %2063 = vmatpush1.msra.mxu0 %v1618
  %2064 = vmatprep.subr.mxu0 %v1596
  %2065 = vmatpush1.msra.mxu0 %v1594
  %2066 = vmatprep.subr.mxu0 %v1572
  %2067 = vmatpush1.msra.mxu0 %v1570
  %2068 = vmatprep.subr.mxu0 %v1548
  %2069 = vmatpush1.msra.mxu0 %v1546
  %2070 = vmatprep.subr.mxu0 %v1524
  %2071 = vmatpush1.msra.mxu0 %v1522
  %2072 = vmatprep.subr.mxu0 0.0
  %2073 = vmatpush2.msra.mxu0 0.0
  %2074 = vmatprep.subr.mxu0 0.0
  %2075 = vmatpush2.msra.mxu0 0.0
  %2076 = vmatprep.subr.mxu0 0.0
  %2077 = vmatpush2.msra.mxu0 0.0
  %2078 = vmatprep.subr.mxu0 0.0
  %2079 = vmatpush2.msra.mxu0 0.0
  %2080 = vmatprep.subr.mxu0 0.0
  %2081 = vmatpush2.msra.mxu0 0.0
  %2082 = vmatprep.subr.mxu0 0.0
  %2083 = vmatpush2.msra.mxu0 0.0
  %2084 = vmatprep.subr.mxu0 0.0
  %2085 = vmatpush2.msra.mxu0 0.0
  %2086 = vmatprep.subr.mxu0 0.0
  %2087 = vmatpush2.msra.mxu0 0.0
  %2088 = vmatprep.subr.mxu0 0.0
  %2089 = vmatpush2.msra.mxu0 0.0
  %2090 = vmatprep.subr.mxu0 0.0
  %2091 = vmatpush2.msra.mxu0 0.0
  %2092 = vmatprep.subr.mxu0 0.0
  %2093 = vmatpush2.msra.mxu0 0.0
  %2094 = vmatprep.subr.mxu0 0.0
  %2095 = vmatpush2.msra.mxu0 0.0
  %2096 = vmatprep.subr.mxu0 0.0
  %2097 = vmatpush2.msra.mxu0 0.0
  %2098 = vmatprep.subr.mxu0 0.0
  %2099 = vmatpush2.msra.mxu0 0.0
  %2100 = vmatprep.subr.mxu0 0.0
  %2101 = vmatpush2.msra.mxu0 0.0
  %2102 = vmatprep.subr.mxu0 0.0
  %2103 = vmatpush2.msra.mxu0 0.0
  %2104 = vmatprep.mubr.f32.mxu0 0.0
  %2105 = vmatmul.mubr.f32.gmra.mxu0 %v1897
  %v2106 = vpop.f32.mrf.mxu0
  %v2107 = vadd.f32 0.0, %v2106
  %v2108 = vpop.f32.mrf.mxu0
  %v2109 = vadd.f32 0.0, %v2108
  %2110 = vdwg.mxu0
  %2111 = vmatprep.subr.mxu0 %v1888
  %2112 = vmatpush1.msra.mxu0 %v1886
  %2113 = vmatprep.subr.mxu0 %v1864
  %2114 = vmatpush1.msra.mxu0 %v1862
  %2115 = vmatprep.subr.mxu0 %v1840
  %2116 = vmatpush1.msra.mxu0 %v1838
  %2117 = vmatprep.subr.mxu0 %v1816
  %2118 = vmatpush1.msra.mxu0 %v1814
  %2119 = vmatprep.subr.mxu0 %v1792
  %2120 = vmatpush1.msra.mxu0 %v1790
  %2121 = vmatprep.subr.mxu0 %v1768
  %2122 = vmatpush1.msra.mxu0 %v1766
  %2123 = vmatprep.subr.mxu0 %v1744
  %2124 = vmatpush1.msra.mxu0 %v1742
  %2125 = vmatprep.subr.mxu0 %v1720
  %2126 = vmatpush1.msra.mxu0 %v1718
  %2127 = vmatprep.subr.mxu0 %v1696
  %2128 = vmatpush1.msra.mxu0 %v1694
  %2129 = vmatprep.subr.mxu0 %v1672
  %2130 = vmatpush1.msra.mxu0 %v1670
  %2131 = vmatprep.subr.mxu0 %v1648
  %2132 = vmatpush1.msra.mxu0 %v1646
  %2133 = vmatprep.subr.mxu0 %v1624
  %2134 = vmatpush1.msra.mxu0 %v1622
  %2135 = vmatprep.subr.mxu0 %v1600
  %2136 = vmatpush1.msra.mxu0 %v1598
  %2137 = vmatprep.subr.mxu0 %v1576
  %2138 = vmatpush1.msra.mxu0 %v1574
  %2139 = vmatprep.subr.mxu0 %v1552
  %2140 = vmatpush1.msra.mxu0 %v1550
  %2141 = vmatprep.subr.mxu0 %v1528
  %2142 = vmatpush1.msra.mxu0 %v1526
  %2143 = vmatprep.subr.mxu0 0.0
  %2144 = vmatpush2.msra.mxu0 0.0
  %2145 = vmatprep.subr.mxu0 0.0
  %2146 = vmatpush2.msra.mxu0 0.0
  %2147 = vmatprep.subr.mxu0 0.0
  %2148 = vmatpush2.msra.mxu0 0.0
  %2149 = vmatprep.subr.mxu0 0.0
  %2150 = vmatpush2.msra.mxu0 0.0
  %2151 = vmatprep.subr.mxu0 0.0
  %2152 = vmatpush2.msra.mxu0 0.0
  %2153 = vmatprep.subr.mxu0 0.0
  %2154 = vmatpush2.msra.mxu0 0.0
  %2155 = vmatprep.subr.mxu0 0.0
  %2156 = vmatpush2.msra.mxu0 0.0
  %2157 = vmatprep.subr.mxu0 0.0
  %2158 = vmatpush2.msra.mxu0 0.0
  %2159 = vmatprep.subr.mxu0 0.0
  %2160 = vmatpush2.msra.mxu0 0.0
  %2161 = vmatprep.subr.mxu0 0.0
  %2162 = vmatpush2.msra.mxu0 0.0
  %2163 = vmatprep.subr.mxu0 0.0
  %2164 = vmatpush2.msra.mxu0 0.0
  %2165 = vmatprep.subr.mxu0 0.0
  %2166 = vmatpush2.msra.mxu0 0.0
  %2167 = vmatprep.subr.mxu0 0.0
  %2168 = vmatpush2.msra.mxu0 0.0
  %2169 = vmatprep.subr.mxu0 0.0
  %2170 = vmatpush2.msra.mxu0 0.0
  %2171 = vmatprep.subr.mxu0 0.0
  %2172 = vmatpush2.msra.mxu0 0.0
  %2173 = vmatprep.subr.mxu0 0.0
  %2174 = vmatpush2.msra.mxu0 0.0
  %2175 = vmatprep.mubr.f32.mxu0 0.0
  %2176 = vmatmul.mubr.f32.gmra.mxu0 %v1897
  %v2177 = vpop.f32.mrf.mxu0
  %v2178 = vadd.f32 0.0, %v2177
  %v2179 = vpop.f32.mrf.mxu0
  %v2180 = vadd.f32 0.0, %v2179
  %2181 = vdwg.mxu0
  %2182 = vmatprep.subr.mxu0 %v1892
  %2183 = vmatpush1.msra.mxu0 %v1890
  %2184 = vmatprep.subr.mxu0 %v1868
  %2185 = vmatpush1.msra.mxu0 %v1866
  %2186 = vmatprep.subr.mxu0 %v1844
  %2187 = vmatpush1.msra.mxu0 %v1842
  %2188 = vmatprep.subr.mxu0 %v1820
  %2189 = vmatpush1.msra.mxu0 %v1818
  %2190 = vmatprep.subr.mxu0 %v1796
  %2191 = vmatpush1.msra.mxu0 %v1794
  %2192 = vmatprep.subr.mxu0 %v1772
  %2193 = vmatpush1.msra.mxu0 %v1770
  %2194 = vmatprep.subr.mxu0 %v1748
  %2195 = vmatpush1.msra.mxu0 %v1746
  %2196 = vmatprep.subr.mxu0 %v1724
  %2197 = vmatpush1.msra.mxu0 %v1722
  %2198 = vmatprep.subr.mxu0 %v1700
  %2199 = vmatpush1.msra.mxu0 %v1698
  %2200 = vmatprep.subr.mxu0 %v1676
  %2201 = vmatpush1.msra.mxu0 %v1674
  %2202 = vmatprep.subr.mxu0 %v1652
  %2203 = vmatpush1.msra.mxu0 %v1650
  %2204 = vmatprep.subr.mxu0 %v1628
  %2205 = vmatpush1.msra.mxu0 %v1626
  %2206 = vmatprep.subr.mxu0 %v1604
  %2207 = vmatpush1.msra.mxu0 %v1602
  %2208 = vmatprep.subr.mxu0 %v1580
  %2209 = vmatpush1.msra.mxu0 %v1578
  %2210 = vmatprep.subr.mxu0 %v1556
  %2211 = vmatpush1.msra.mxu0 %v1554
  %2212 = vmatprep.subr.mxu0 %v1532
  %2213 = vmatpush1.msra.mxu0 %v1530
  %2214 = vmatprep.subr.mxu0 0.0
  %2215 = vmatpush2.msra.mxu0 0.0
  %2216 = vmatprep.subr.mxu0 0.0
  %2217 = vmatpush2.msra.mxu0 0.0
  %2218 = vmatprep.subr.mxu0 0.0
  %2219 = vmatpush2.msra.mxu0 0.0
  %2220 = vmatprep.subr.mxu0 0.0
  %2221 = vmatpush2.msra.mxu0 0.0
  %2222 = vmatprep.subr.mxu0 0.0
  %2223 = vmatpush2.msra.mxu0 0.0
  %2224 = vmatprep.subr.mxu0 0.0
  %2225 = vmatpush2.msra.mxu0 0.0
  %2226 = vmatprep.subr.mxu0 0.0
  %2227 = vmatpush2.msra.mxu0 0.0
  %2228 = vmatprep.subr.mxu0 0.0
  %2229 = vmatpush2.msra.mxu0 0.0
  %2230 = vmatprep.subr.mxu0 0.0
  %2231 = vmatpush2.msra.mxu0 0.0
  %2232 = vmatprep.subr.mxu0 0.0
  %2233 = vmatpush2.msra.mxu0 0.0
  %2234 = vmatprep.subr.mxu0 0.0
  %2235 = vmatpush2.msra.mxu0 0.0
  %2236 = vmatprep.subr.mxu0 0.0
  %2237 = vmatpush2.msra.mxu0 0.0
  %2238 = vmatprep.subr.mxu0 0.0
  %2239 = vmatpush2.msra.mxu0 0.0
  %2240 = vmatprep.subr.mxu0 0.0
  %2241 = vmatpush2.msra.mxu0 0.0
  %2242 = vmatprep.subr.mxu0 0.0
  %2243 = vmatpush2.msra.mxu0 0.0
  %2244 = vmatprep.subr.mxu0 0.0
  %2245 = vmatpush2.msra.mxu0 0.0
  %2246 = vmatprep.mubr.f32.mxu0 0.0
  %2247 = vmatmul.mubr.f32.gmra.mxu0 %v1897
  %v2248 = vpop.f32.mrf.mxu0
  %v2249 = vadd.f32 0.0, %v2248
  %v2250 = vpop.f32.mrf.mxu0
  %v2251 = vadd.f32 0.0, %v2250
  %2252 = vdwg.mxu0
  %2253 = vmatprep.subr.mxu0 %v1896
  %2254 = vmatpush1.msra.mxu0 %v1894
  %2255 = vmatprep.subr.mxu0 %v1872
  %2256 = vmatpush1.msra.mxu0 %v1870
  %2257 = vmatprep.subr.mxu0 %v1848
  %2258 = vmatpush1.msra.mxu0 %v1846
  %2259 = vmatprep.subr.mxu0 %v1824
  %2260 = vmatpush1.msra.mxu0 %v1822
  %2261 = vmatprep.subr.mxu0 %v1800
  %2262 = vmatpush1.msra.mxu0 %v1798
  %2263 = vmatprep.subr.mxu0 %v1776
  %2264 = vmatpush1.msra.mxu0 %v1774
  %2265 = vmatprep.subr.mxu0 %v1752
  %2266 = vmatpush1.msra.mxu0 %v1750
  %2267 = vmatprep.subr.mxu0 %v1728
  %2268 = vmatpush1.msra.mxu0 %v1726
  %2269 = vmatprep.subr.mxu0 %v1704
  %2270 = vmatpush1.msra.mxu0 %v1702
  %2271 = vmatprep.subr.mxu0 %v1680
  %2272 = vmatpush1.msra.mxu0 %v1678
  %2273 = vmatprep.subr.mxu0 %v1656
  %2274 = vmatpush1.msra.mxu0 %v1654
  %2275 = vmatprep.subr.mxu0 %v1632
  %2276 = vmatpush1.msra.mxu0 %v1630
  %2277 = vmatprep.subr.mxu0 %v1608
  %2278 = vmatpush1.msra.mxu0 %v1606
  %2279 = vmatprep.subr.mxu0 %v1584
  %2280 = vmatpush1.msra.mxu0 %v1582
  %2281 = vmatprep.subr.mxu0 %v1560
  %2282 = vmatpush1.msra.mxu0 %v1558
  %2283 = vmatprep.subr.mxu0 %v1536
  %2284 = vmatpush1.msra.mxu0 %v1534
  %2285 = vmatprep.subr.mxu0 0.0
  %2286 = vmatpush2.msra.mxu0 0.0
  %2287 = vmatprep.subr.mxu0 0.0
  %2288 = vmatpush2.msra.mxu0 0.0
  %2289 = vmatprep.subr.mxu0 0.0
  %2290 = vmatpush2.msra.mxu0 0.0
  %2291 = vmatprep.subr.mxu0 0.0
  %2292 = vmatpush2.msra.mxu0 0.0
  %2293 = vmatprep.subr.mxu0 0.0
  %2294 = vmatpush2.msra.mxu0 0.0
  %2295 = vmatprep.subr.mxu0 0.0
  %2296 = vmatpush2.msra.mxu0 0.0
  %2297 = vmatprep.subr.mxu0 0.0
  %2298 = vmatpush2.msra.mxu0 0.0
  %2299 = vmatprep.subr.mxu0 0.0
  %2300 = vmatpush2.msra.mxu0 0.0
  %2301 = vmatprep.subr.mxu0 0.0
  %2302 = vmatpush2.msra.mxu0 0.0
  %2303 = vmatprep.subr.mxu0 0.0
  %2304 = vmatpush2.msra.mxu0 0.0
  %2305 = vmatprep.subr.mxu0 0.0
  %2306 = vmatpush2.msra.mxu0 0.0
  %2307 = vmatprep.subr.mxu0 0.0
  %2308 = vmatpush2.msra.mxu0 0.0
  %2309 = vmatprep.subr.mxu0 0.0
  %2310 = vmatpush2.msra.mxu0 0.0
  %2311 = vmatprep.subr.mxu0 0.0
  %2312 = vmatpush2.msra.mxu0 0.0
  %2313 = vmatprep.subr.mxu0 0.0
  %2314 = vmatpush2.msra.mxu0 0.0
  %2315 = vmatprep.subr.mxu0 0.0
  %2316 = vmatpush2.msra.mxu0 0.0
  %2317 = vmatprep.mubr.f32.mxu0 0.0
  %2318 = vmatmul.mubr.f32.gmra.mxu0 %v1897
  %v2319 = vpop.f32.mrf.mxu0
  %v2320 = vadd.f32 0.0, %v2319
  %v2321 = vpop.f32.mrf.mxu0
  %v2322 = vadd.f32 0.0, %v2321
  %2323 = vdwg.mxu0
  %v2324 = vrcp.pop %v1965
  %v2325 = vrcp.pop %v1967
  %v2326 = vrcp.pop %v2036
  %v2327 = vrcp.pop %v2038
  %v2328 = vrcp.pop %v2107
  %v2329 = vrcp.pop %v2109
  %v2330 = vrcp.pop %v2178
  %v2331 = vrcp.pop %v2180
  %v2332 = vrcp.pop %v2249
  %v2333 = vrcp.pop %v2251
  %v2334 = vrcp.pop %v2320
  %v2335 = vrcp.pop %v2322
  %v2348 = vrot.slane %v2324, 1
  %v2349 = vrot.slane %v2325, 1
  %v2350 = vrot.slane %v2326, 1
  %v2351 = vrot.slane %v2327, 1
  %v2352 = vrot.slane %v2328, 1
  %v2353 = vrot.slane %v2329, 1
  %v2354 = vrot.slane %v2330, 1
  %v2355 = vrot.slane %v2331, 1
  %v2356 = vrot.slane %v2332, 1
  %v2357 = vrot.slane %v2333, 1
  %v2358 = vrot.slane %v2334, 1
  %v2359 = vrot.slane %v2335, 1
  %v2372 = vmul.f32 %v1965, %v2348
  %v2373 = vmul.f32 %v1967, %v2349
  %v2374 = vmul.f32 %v2036, %v2350
  %v2375 = vmul.f32 %v2038, %v2351
  %v2376 = vmul.f32 %v2107, %v2352
  %v2377 = vmul.f32 %v2109, %v2353
  %v2378 = vmul.f32 %v2178, %v2354
  %v2379 = vmul.f32 %v2180, %v2355
  %v2380 = vmul.f32 %v2249, %v2356
  %v2381 = vmul.f32 %v2251, %v2357
  %v2382 = vmul.f32 %v2320, %v2358
  %v2383 = vmul.f32 %v2322, %v2359
  %v2396 = vcombine.low %v2372, %v2373
  %v2397 = vcombine.low %v2374, %v2375
  %v2398 = vcombine.low %v2376, %v2377
  %v2399 = vcombine.low %v2378, %v2379
  %v2401 = vunpack.c.l.s4 1966171168
  %v2402 = vunpack.c.0.s8 %v2401
  %v2403 = vlaneseq
  %v2404 = vshrl.u32 %v2403, 7
  %v2405 = vsub.s32 %v2402, %v2404
  %v2406 = vrot.slane %v2396, %v2405
  %v2408 = vunpack.c.l.s4 1966171168
  %v2409 = vunpack.c.0.s8 %v2408
  %v2410 = vlaneseq
  %v2411 = vshrl.u32 %v2410, 7
  %v2412 = vsub.s32 %v2409, %v2411
  %v2413 = vrot.slane %v2397, %v2412
  %v2415 = vunpack.c.l.s4 1966171168
  %v2416 = vunpack.c.0.s8 %v2415
  %v2417 = vlaneseq
  %v2418 = vshrl.u32 %v2417, 7
  %v2419 = vsub.s32 %v2416, %v2418
  %v2420 = vrot.slane %v2398, %v2419
  %v2422 = vunpack.c.l.s4 1966171168
  %v2423 = vunpack.c.0.s8 %v2422
  %v2424 = vlaneseq
  %v2425 = vshrl.u32 %v2424, 7
  %v2426 = vsub.s32 %v2423, %v2425
  %v2427 = vrot.slane %v2399, %v2426
  %v2428 = vcombine.low %v2406, %v2413
  %v2429 = vcombine.low %v2420, %v2427
  %v2431 = vunpack.c.l.s4 1966171168
  %v2432 = vunpack.c.0.s8 %v2431
  %v2433 = vlaneseq
  %v2434 = vshrl.u32 %v2433, 7
  %v2435 = vsub.s32 %v2432, %v2434
  %v2436 = vrot.slane %v2428, %v2435
  %v2438 = vunpack.c.l.s4 1966171168
  %v2439 = vunpack.c.0.s8 %v2438
  %v2440 = vlaneseq
  %v2441 = vshrl.u32 %v2440, 7
  %v2442 = vsub.s32 %v2439, %v2441
  %v2443 = vrot.slane %v2429, %v2442
  %v2444 = vcombine.low %v2436, %v2443
  %v2445 = vcombine.low %v2380, %v2381
  %v2446 = vcombine.low %v2382, %v2383
  %v2448 = vunpack.c.l.s4 1966171168
  %v2449 = vunpack.c.0.s8 %v2448
  %v2450 = vlaneseq
  %v2451 = vshrl.u32 %v2450, 7
  %v2452 = vsub.s32 %v2449, %v2451
  %v2453 = vrot.slane %v2445, %v2452
  %v2455 = vunpack.c.l.s4 1966171168
  %v2456 = vunpack.c.0.s8 %v2455
  %v2457 = vlaneseq
  %v2458 = vshrl.u32 %v2457, 7
  %v2459 = vsub.s32 %v2456, %v2458
  %v2460 = vrot.slane %v2446, %v2459
  %v2461 = vcombine.low %v2453, %v2460
  %v2463 = vunpack.c.l.s4 1966171168
  %v2464 = vunpack.c.0.s8 %v2463
  %v2465 = vlaneseq
  %v2466 = vshrl.u32 %v2465, 7
  %v2467 = vsub.s32 %v2464, %v2466
  %v2468 = vrot.slane %v2461, %v2467
  %2471 = vst [vmem:[%s3] sm:$0xff] %v2444
  %v2472 = vlaneseq
  %vm2473 = vcmp.ge.s32.totalorder %v2472, 0
  %vm2474 = vcmp.lt.s32.totalorder %v2472, 512
  %vm2475 = vmand %vm2473, %vm2474
  %2476 = vst.msk [vmem:[%s3 + $0x8] sm:$0xf] %vm2475, %v2468
  // Predicated region
  $region14: #{dpt_bins_forward.1} parent=0 // pred_check
    _
  $region15: #{dpt_bins_forward.1} parent=0 // pred_check_branch
    %2478 = sbr.rel (0) target = $region17
  $region16: #{dpt_bins_forward.1} parent=0 // pred_region
    _
  $region17: #{dpt_bins_forward.1} parent=0 // pred_fallthru
    _
  // Predicated region
  $region18: #{dpt_bins_forward.1} parent=0 // pred_check
    _
  $region19: #{dpt_bins_forward.1} parent=0 // pred_check_branch
    %2480 = sbr.rel (0) target = $region21
  $region20: #{dpt_bins_forward.1} parent=0 // pred_region
    _
  $region21: #{dpt_bins_forward.1} parent=0 // pred_fallthru
    _

</llo_original>
